<compile_context>
chip_gen: v7x
topology: tpu7x:2x2x1
jax: 0.10.0
libtpu: 0.0.40
codegen_flags: <defaults>
</compile_context>

<pallas_src>
import functools

import numpy as np
import jax
import jax.numpy as jnp
from jax.experimental import pallas as pl
from jax.experimental.pallas import tpu as pltpu


# ----------------------------------------------------------------------------- helpers


def _l2_normalize(x, eps=1e-12):
    # F.normalize(x, p=2, dim=1): x / max(||x||, eps).  rsqrt keeps the divide off the VALU.
    sq = jnp.sum(x * x, axis=-1, keepdims=True)
    return x * jax.lax.rsqrt(jnp.maximum(sq, eps * eps))


def _row_block_sqdist(x_blk, x_all, row0, *, normalize):
    """Squared Euclidean distances of a row block against all rows.

    Returns (d2, off_diag) with the diagonal of d2 forced to exactly 0 (torch.cdist
    gives an exact-zero diagonal, and the off-diag mask is reused by the callers).
    """
    xb = x_blk.astype(jnp.float32)
    xa = x_all.astype(jnp.float32)
    if normalize:
        xb = _l2_normalize(xb)
        xa = _l2_normalize(xa)
    dn = (((1,), (1,)), ((), ()))  # contract the feature dim: xb @ xa.T
    gram = jax.lax.dot_general(xb, xa, dn, preferred_element_type=jnp.float32)
    if normalize:
        # Unit-norm rows: ||xi - xj||^2 = 2 - 2 <xi, xj>  (no ||x||^2 matmuls needed).
        d2 = 2.0 - 2.0 * gram
    else:
        sq_b = jnp.sum(xb * xb, axis=-1, keepdims=True)          # (TM, 1)
        sq_a = jnp.sum(xa * xa, axis=-1, keepdims=True)          # (N, 1)
        # Rank-1 broadcast of sq_a along rows: (TM,1)x(1,N), not a full ones(N,D)@u matmul.
        ones = jnp.ones((xb.shape[0], 1), jnp.float32)
        sq_row = jax.lax.dot_general(ones, sq_a, dn, preferred_element_type=jnp.float32)
        d2 = sq_b + sq_row - 2.0 * gram
    tm, n = gram.shape
    grow = row0 + jax.lax.broadcasted_iota(jnp.int32, (tm, n), 0)
    gcol = jax.lax.broadcasted_iota(jnp.int32, (tm, n), 1)
    off = (grow != gcol).astype(jnp.float32)
    d2 = jnp.maximum(d2, 0.0) * off
    return d2, off


def _row_block_size(n):
    if n <= 128:
        return n
    assert n % 128 == 0, "pad N to a multiple of 128 for the tiled kernels"
    return 128


# ----------------------------------------------------------------------------- kernels


def _wp_kernel(t_blk_ref, t_all_ref, wp_ref, *, sigma, block_rows):
    """W_P row block = exp(-cdist(t, t)^2 / sigma)."""
    row0 = pl.program_id(0) * block_rows
    d2, _ = _row_block_sqdist(t_blk_ref[...], t_all_ref[...], row0, normalize=True)
    wp_ref[...] = jnp.exp(-d2 * (1.0 / sigma))


def _weights_kernel(wp_ref, topk_ref, w_ref, *, topk, k_half):
    """W = (W_P + W_C)/2 from W_P and int32 top-k neighbour indices."""
    wp = wp_ref[...]
    tk = topk_ref[...]                      # (N, topk) int32
    n = wp.shape[0]
    col = jax.lax.broadcasted_iota(jnp.int32, (n, n), 1)

    # W_NN[i, j] = 1 iff j is a top-k neighbour of i (built from indices, no dense
    # one-hot matrix streamed from HBM).
    nn_mask = col == tk[:, 0:1]
    for k in range(1, topk):
        nn_mask = jnp.logical_or(nn_mask, col == tk[:, k:k + 1])
    w_nn = nn_mask.astype(jnp.float32)

    # Mutual kNN graph V: product of 0/1 == ((W_NN + W_NN.T)/2 == 1) but without the
    # exact-float-equality test.
    v = w_nn * w_nn.T

    # counts[i, j] = |N_V(i) ∩ N_V(j)|  (V symmetric).  bf16 is exact for 0/1 inputs
    # and runs the MXU at full rate; accumulate in f32.
    vb = v.astype(jnp.bfloat16)
    counts = jnp.dot(vb, vb, preferred_element_type=jnp.float32)
    rowsum = jnp.sum(v, axis=1, keepdims=True)
    w_c_tilda = jnp.where(rowsum > 0.0, v * counts / jnp.maximum(rowsum, 1.0), 0.0)

    # W_C_hat = W_C_tilda[topk_half_index].mean(1) == (C @ W_C_tilda) / k_half, where
    # C[i, m] = #{k : topk_half_index[i, k] == m} (0/1, indices are distinct).
    c_sel = (col == tk[:, 0:1]).astype(jnp.float32)
    for k in range(1, k_half):
        c_sel = c_sel + (col == tk[:, k:k + 1]).astype(jnp.float32)
    w_c_hat = jnp.dot(c_sel, w_c_tilda, preferred_element_type=jnp.float32) * (1.0 / k_half)

    w_c = (w_c_hat + w_c_hat.T) * 0.5
    w_ref[...] = (wp + w_c) * 0.5


def _rc_loss_kernel(s_blk_ref, s_all_ref, w_ref, loss_ref, *, delta, disable_mu,
                    block_rows, inv_denom):
    """Row-block pull/push contributions, accumulated into the resident (1,1) output."""
    i = pl.program_id(0)

    @pl.when(i == 0)
    def _():
        loss_ref[...] = jnp.zeros_like(loss_ref)

    row0 = i * block_rows
    d2, off = _row_block_sqdist(s_blk_ref[...], s_all_ref[...], row0, normalize=disable_mu)
    d = jnp.sqrt(d2)
    d = d / jnp.mean(d, axis=1, keepdims=True)   # row-mean normalisation (diag = 0 included)
    w = w_ref[...]
    # relu(S_dist)^2 * W * (1-I): S_dist >= 0 and its diagonal is exactly 0, so the
    # pull term needs no mask; only the push term does.  Sums are taken immediately
    # so no NxN temporaries outlive the block.
    pull = d * d * w
    push = jnp.maximum(delta - d, 0.0)
    push = push * push * (1.0 - w) * off
    part = (jnp.sum(pull) + jnp.sum(push)) * inv_denom
    loss_ref[...] = loss_ref[...] + jnp.full((1, 1), part, jnp.float32)


def _kl_loss_kernel(f_blk_ref, f_all_ref, g_blk_ref, g_all_ref, loss_ref, *,
                    disable_mu, block_rows, inv_denom):
    """Row-block KL(softmax(-S_bg_dist) || softmax(-S_dist)), accumulated."""
    i = pl.program_id(0)

    @pl.when(i == 0)
    def _():
        loss_ref[...] = jnp.zeros_like(loss_ref)

    row0 = i * block_rows
    d2f, _ = _row_block_sqdist(f_blk_ref[...], f_all_ref[...], row0, normalize=disable_mu)
    d2g, _ = _row_block_sqdist(g_blk_ref[...], g_all_ref[...], row0, normalize=disable_mu)
    df = jnp.sqrt(d2f)
    dg = jnp.sqrt(d2g)
    df = df / jnp.mean(df, axis=1, keepdims=True)
    dg = dg / jnp.mean(dg, axis=1, keepdims=True)

    a = -df                                   # student logits  (-S_dist)
    b = -dg                                   # teacher logits  (-S_bg_dist), T = 1
    a_sh = a - jnp.max(a, axis=1, keepdims=True)
    log_q = a_sh - jnp.log(jnp.sum(jnp.exp(a_sh), axis=1, keepdims=True))
    b_sh = b - jnp.max(b, axis=1, keepdims=True)
    eb = jnp.exp(b_sh)
    se = jnp.sum(eb, axis=1, keepdims=True)
    p = eb / se
    log_p = b_sh - jnp.log(se)
    part = jnp.sum(p * (log_p - log_q)) * inv_denom
    loss_ref[...] = loss_ref[...] + jnp.full((1, 1), part, jnp.float32)


# ----------------------------------------------------------------------------- wrappers


def _compute_wp(t_emb, *, sigma, block_rows):
    n, d = t_emb.shape
    g = n // block_rows
    return pl.pallas_call(
        functools.partial(_wp_kernel, sigma=sigma, block_rows=block_rows),
        grid=(g,),
        in_specs=[pl.BlockSpec((block_rows, d), lambda i: (i, 0)),
                  pl.BlockSpec((n, d), lambda i: (0, 0))],
        out_specs=pl.BlockSpec((block_rows, n), lambda i: (i, 0)),
        out_shape=jax.ShapeDtypeStruct((n, n), jnp.float32),
        compiler_params=pltpu.CompilerParams(dimension_semantics=("parallel",)),
    )(t_emb, t_emb)


def _compute_w(w_p, topk_index, *, topk, k_half):
    n = w_p.shape[0]
    # TODO(synk): this graph-consensus kernel still holds full NxN blocks (grid=(1,));
    # tile it like the loss kernels for very large N on v7x (64 MiB VMEM).
    return pl.pallas_call(
        functools.partial(_weights_kernel, topk=topk, k_half=k_half),
        grid=(1,),
        in_specs=[pl.BlockSpec((n, n), lambda i: (0, 0)),
                  pl.BlockSpec((n, topk), lambda i: (0, 0))],
        out_specs=pl.BlockSpec((n, n), lambda i: (0, 0)),
        out_shape=jax.ShapeDtypeStruct((n, n), jnp.float32),
        compiler_params=pltpu.CompilerParams(dimension_semantics=("arbitrary",)),
    )(w_p, topk_index)


def _rc_weight_matrix(t_emb, idx, *, sigma, topk, block_rows):
    """W = (W_P + W_C)/2; depends only on (t_emb, idx)."""
    w_p = _compute_wp(t_emb, sigma=sigma, block_rows=block_rows)
    # TODO(synk): top-k neighbour selection has no clean Pallas TPU equivalent;
    # done with jax.lax.top_k on the kernel-produced W_P (tiny glue, only the int32
    # index matrix goes back into the weights kernel).
    w_p_copy = jnp.where(idx[:, None] == idx[None, :], 1.0, w_p)
    _, topk_index = jax.lax.top_k(w_p_copy, topk)
    topk_index = topk_index.astype(jnp.int32)
    k_half = int(np.around(topk / 2))
    return _compute_w(w_p, topk_index, topk=topk, k_half=k_half)


def _rc_pull_push(s_emb, w, *, delta, disable_mu, block_rows):
    n, d = s_emb.shape
    g = n // block_rows
    loss = pl.pallas_call(
        functools.partial(_rc_loss_kernel, delta=delta, disable_mu=disable_mu,
                          block_rows=block_rows, inv_denom=1.0 / float(n * (n - 1))),
        grid=(g,),
        in_specs=[pl.BlockSpec((block_rows, d), lambda i: (i, 0)),
                  pl.BlockSpec((n, d), lambda i: (0, 0)),
                  pl.BlockSpec((block_rows, n), lambda i: (i, 0))],
        out_specs=pl.BlockSpec((1, 1), lambda i: (0, 0)),
        out_shape=jax.ShapeDtypeStruct((1, 1), jnp.float32),
        compiler_params=pltpu.CompilerParams(dimension_semantics=("arbitrary",)),
    )(s_emb, s_emb, w)
    return loss[0, 0]


def _kl_loss(s_f, s_g, *, disable_mu, block_rows):
    n, d = s_f.shape
    g = n // block_rows
    loss = pl.pallas_call(
        functools.partial(_kl_loss_kernel, disable_mu=disable_mu,
                          block_rows=block_rows, inv_denom=1.0 / float(n)),
        grid=(g,),
        in_specs=[pl.BlockSpec((block_rows, d), lambda i: (i, 0)),
                  pl.BlockSpec((n, d), lambda i: (0, 0)),
                  pl.BlockSpec((block_rows, d), lambda i: (i, 0)),
                  pl.BlockSpec((n, d), lambda i: (0, 0))],
        out_specs=pl.BlockSpec((1, 1), lambda i: (0, 0)),
        out_shape=jax.ShapeDtypeStruct((1, 1), jnp.float32),
        compiler_params=pltpu.CompilerParams(dimension_semantics=("arbitrary",)),
    )(s_f, s_f, s_g, s_g)
    return loss[0, 0]


def stml_loss(s_f, s_g, t_g, idx, *, sigma, delta, view, disable_mu, topk):
    """STML_loss.forward: returns dict(RC=..., KL=..., loss=...)."""
    del view  # batch_size = N // view is computed but unused in the reference forward
    n, _ = s_f.shape
    tm = _row_block_size(n)
    # The neighbourhood-consensus weight matrix depends only on (t_g, idx):
    # compute it once and share it between the two RC terms.
    w = _rc_weight_matrix(t_g, idx, sigma=sigma, topk=topk, block_rows=tm)
    loss_rc_f = _rc_pull_push(s_f, w, delta=delta, disable_mu=disable_mu, block_rows=tm)
    loss_rc_g = _rc_pull_push(s_g, w, delta=delta, disable_mu=disable_mu, block_rows=tm)
    loss_rc = 0.5 * (loss_rc_f + loss_rc_g)
    loss_kl = _kl_loss(s_f, s_g, disable_mu=disable_mu, block_rows=tm)
    return dict(RC=loss_rc, KL=loss_kl, loss=loss_rc + loss_kl)


# ----------------------------------------------------------------------------- demo


if __name__ == "__main__":
    key = jax.random.PRNGKey(0)
    k1, k2, k3 = jax.random.split(key, 3)

    # Small shapes consistent with the module: N samples of dim D, 2 views of 8 items.
    N, D = 16, 32
    view, topk = 2, 4
    sigma, delta = 1.0, 1.0
    disable_mu = True

    s_f = jax.random.normal(k1, (N, D), dtype=jnp.float32)
    s_g = jax.random.normal(k2, (N, D), dtype=jnp.float32)
    t_g = jax.random.normal(k3, (N, D), dtype=jnp.float32)
    idx = jnp.tile(jnp.arange(N // view, dtype=jnp.int32), view)

    fn = jax.jit(functools.partial(stml_loss, sigma=sigma, delta=delta, view=view,
                                   disable_mu=disable_mu, topk=topk))
    out = fn(s_f, s_g, t_g, idx)
    jax.block_until_ready(out["loss"])
    print("KERNEL_OK")
</pallas_src>

<mosaic_0001>
module attributes {stable_mosaic.version = 11 : i64} {
  func.func @_wp_kernel(%arg0: i32, %arg1: memref<16x32xf32, #tpu.memory_space<vmem>>, %arg2: memref<16x32xf32, #tpu.memory_space<vmem>>, %arg3: memref<16x16xf32, #tpu.memory_space<vmem>>) attributes {dimension_semantics = [#tpu.dimension_semantics<parallel>], iteration_bounds = array<i64: 1>, scalar_prefetch = 0 : i64, scratch_operands = 0 : i64, tpu.core_type = #tpu.core_type<tc>, window_params = [{transform_indices = @transform_0, window_bounds = array<i64: 16, 32>}, {pipeline_mode = #tpu.pipeline_mode<synchronous>, transform_indices = @transform_1, window_bounds = array<i64: 16, 32>}, {transform_indices = @transform_2, window_bounds = array<i64: 16, 16>}]} {
    %c16_i32 = arith.constant 16 : i32
    %0 = arith.muli %arg0, %c16_i32 : i32
    %c0 = arith.constant 0 : index
    %c0_0 = arith.constant 0 : index
    %1 = vector.load %arg1[%c0, %c0_0] : memref<16x32xf32, #tpu.memory_space<vmem>>, vector<16x32xf32>
    %c0_1 = arith.constant 0 : index
    %c0_2 = arith.constant 0 : index
    %2 = vector.load %arg2[%c0_1, %c0_2] : memref<16x32xf32, #tpu.memory_space<vmem>>, vector<16x32xf32>
    %3 = arith.mulf %1, %1 : vector<16x32xf32>
    %cst = arith.constant dense<0.000000e+00> : vector<16xf32>
    %4 = vector.multi_reduction <add>, %3, %cst [1] : vector<16x32xf32> to vector<16xf32>
    %5 = vector.shape_cast %4 : vector<16xf32> to vector<16x1xf32>
    %cst_3 = arith.constant 1.000000e-24 : f32
    %6 = vector.broadcast %cst_3 : f32 to vector<16x1xf32>
    %7 = arith.maximumf %5, %6 : vector<16x1xf32>
    %8 = math.rsqrt %7 : vector<16x1xf32>
    %9 = vector.broadcast %8 : vector<16x1xf32> to vector<16x32xf32>
    %10 = arith.mulf %1, %9 : vector<16x32xf32>
    %11 = arith.mulf %2, %2 : vector<16x32xf32>
    %cst_4 = arith.constant dense<0.000000e+00> : vector<16xf32>
    %12 = vector.multi_reduction <add>, %11, %cst_4 [1] : vector<16x32xf32> to vector<16xf32>
    %13 = vector.shape_cast %12 : vector<16xf32> to vector<16x1xf32>
    %cst_5 = arith.constant 1.000000e-24 : f32
    %14 = vector.broadcast %cst_5 : f32 to vector<16x1xf32>
    %15 = arith.maximumf %13, %14 : vector<16x1xf32>
    %16 = math.rsqrt %15 : vector<16x1xf32>
    %17 = vector.broadcast %16 : vector<16x1xf32> to vector<16x32xf32>
    %18 = arith.mulf %2, %17 : vector<16x32xf32>
    %cst_6 = arith.constant dense<0.000000e+00> : vector<16x16xf32>
    %19 = tpu.matmul %10, %18, %cst_6 {dimension_numbers = #tpu.dot_dimension_numbers<[1], [1], [0], [0], [0, 0, 1, 0], [], []>} : vector<16x32xf32>, vector<16x32xf32>, vector<16x16xf32> -> vector<16x16xf32>
    %cst_7 = arith.constant 2.000000e+00 : f32
    %20 = vector.broadcast %cst_7 : f32 to vector<16x16xf32>
    %21 = arith.mulf %20, %19 : vector<16x16xf32>
    %cst_8 = arith.constant 2.000000e+00 : f32
    %22 = vector.broadcast %cst_8 : f32 to vector<16x16xf32>
    %23 = arith.subf %22, %21 : vector<16x16xf32>
    %24 = tpu.iota {dimensions = array<i32: 0>} : vector<16x16xi32>
    %25 = vector.broadcast %0 : i32 to vector<16x16xi32>
    %26 = arith.addi %25, %24 : vector<16x16xi32>
    %27 = tpu.iota {dimensions = array<i32: 1>} : vector<16x16xi32>
    %28 = arith.cmpi ne, %26, %27 : vector<16x16xi32>
    %29 = arith.extui %28 : vector<16x16xi1> to vector<16x16xi32>
    %30 = arith.sitofp %29 : vector<16x16xi32> to vector<16x16xf32>
    %cst_9 = arith.constant 0.000000e+00 : f32
    %31 = vector.broadcast %cst_9 : f32 to vector<16x16xf32>
    %32 = arith.maximumf %23, %31 : vector<16x16xf32>
    %33 = arith.mulf %32, %30 : vector<16x16xf32>
    %cst_10 = arith.constant 0.000000e+00 : f32
    %34 = vector.broadcast %cst_10 : f32 to vector<16x16xf32>
    %35 = arith.subf %34, %33 : vector<16x16xf32>
    %cst_11 = arith.constant 1.000000e+00 : f32
    %36 = vector.broadcast %cst_11 : f32 to vector<16x16xf32>
    %37 = arith.mulf %35, %36 : vector<16x16xf32>
    %38 = math.exp %37 : vector<16x16xf32>
    %c0_12 = arith.constant 0 : index
    %c0_13 = arith.constant 0 : index
    %39 = vector.load %arg3[%c0_12, %c0_13] : memref<16x16xf32, #tpu.memory_space<vmem>>, vector<16x16xf32>
    tpu.vector_store %arg3[%c0_12, %c0_13], %38 {strides = array<i32>} : memref<16x16xf32, #tpu.memory_space<vmem>>, vector<16x16xf32>,
    return
  }
  func.func @transform_0(%arg0: i32) -> (i32, i32) {
    %c0_i32 = arith.constant 0 : i32
    %c0_i32_0 = arith.constant 0 : i32
    return %arg0, %c0_i32 : i32, i32
  }
  func.func @transform_1(%arg0: i32) -> (i32, i32) {
    %c0_i32 = arith.constant 0 : i32
    %c0_i32_0 = arith.constant 0 : i32
    %c0_i32_1 = arith.constant 0 : i32
    return %c0_i32, %c0_i32_0 : i32, i32
  }
  func.func @transform_2(%arg0: i32) -> (i32, i32) {
    %c0_i32 = arith.constant 0 : i32
    %c0_i32_0 = arith.constant 0 : i32
    return %arg0, %c0_i32 : i32, i32
  }
}

module attributes {stable_mosaic.version = 11 : i64} {
  func.func @_rc_loss_kernel(%arg0: i32, %arg1: memref<16x32xf32, #tpu.memory_space<vmem>>, %arg2: memref<16x32xf32, #tpu.memory_space<vmem>>, %arg3: memref<16x16xf32, #tpu.memory_space<vmem>>, %arg4: memref<1x1xf32, #tpu.memory_space<vmem>>) attributes {dimension_semantics = [#tpu.dimension_semantics<arbitrary>], iteration_bounds = array<i64: 1>, scalar_prefetch = 0 : i64, scratch_operands = 0 : i64, tpu.core_type = #tpu.core_type<tc>, window_params = [{transform_indices = @transform_0, window_bounds = array<i64: 16, 32>}, {pipeline_mode = #tpu.pipeline_mode<synchronous>, transform_indices = @transform_1, window_bounds = array<i64: 16, 32>}, {transform_indices = @transform_2, window_bounds = array<i64: 16, 16>}, {pipeline_mode = #tpu.pipeline_mode<synchronous>, transform_indices = @transform_3, window_bounds = array<i64: 1, 1>}]} {
    %c0_i32 = arith.constant 0 : i32
    %0 = arith.cmpi eq, %arg0, %c0_i32 : i32
    %1 = arith.extui %0 : i1 to i32
    %c0_i32_0 = arith.constant 0 : i32
    %2 = arith.cmpi ne, %1, %c0_i32_0 : i32
    scf.if %2 {
      %cst_25 = arith.constant 0.000000e+00 : f32
      %70 = vector.broadcast %cst_25 : f32 to vector<1x1xf32>
      %c0_26 = arith.constant 0 : index
      %c0_27 = arith.constant 0 : index
      %71 = vector.load %arg4[%c0_26, %c0_27] : memref<1x1xf32, #tpu.memory_space<vmem>>, vector<1x1xf32>
      tpu.vector_store %arg4[%c0_26, %c0_27], %70 {strides = array<i32>} : memref<1x1xf32, #tpu.memory_space<vmem>>, vector<1x1xf32>,
    } else {
    }
    %c16_i32 = arith.constant 16 : i32
    %3 = arith.muli %arg0, %c16_i32 : i32
    %c0 = arith.constant 0 : index
    %c0_1 = arith.constant 0 : index
    %4 = vector.load %arg1[%c0, %c0_1] : memref<16x32xf32, #tpu.memory_space<vmem>>, vector<16x32xf32>
    %c0_2 = arith.constant 0 : index
    %c0_3 = arith.constant 0 : index
    %5 = vector.load %arg2[%c0_2, %c0_3] : memref<16x32xf32, #tpu.memory_space<vmem>>, vector<16x32xf32>
    %6 = arith.mulf %4, %4 : vector<16x32xf32>
    %cst = arith.constant dense<0.000000e+00> : vector<16xf32>
    %7 = vector.multi_reduction <add>, %6, %cst [1] : vector<16x32xf32> to vector<16xf32>
    %8 = vector.shape_cast %7 : vector<16xf32> to vector<16x1xf32>
    %cst_4 = arith.constant 1.000000e-24 : f32
    %9 = vector.broadcast %cst_4 : f32 to vector<16x1xf32>
    %10 = arith.maximumf %8, %9 : vector<16x1xf32>
    %11 = math.rsqrt %10 : vector<16x1xf32>
    %12 = vector.broadcast %11 : vector<16x1xf32> to vector<16x32xf32>
    %13 = arith.mulf %4, %12 : vector<16x32xf32>
    %14 = arith.mulf %5, %5 : vector<16x32xf32>
    %cst_5 = arith.constant dense<0.000000e+00> : vector<16xf32>
    %15 = vector.multi_reduction <add>, %14, %cst_5 [1] : vector<16x32xf32> to vector<16xf32>
    %16 = vector.shape_cast %15 : vector<16xf32> to vector<16x1xf32>
    %cst_6 = arith.constant 1.000000e-24 : f32
    %17 = vector.broadcast %cst_6 : f32 to vector<16x1xf32>
    %18 = arith.maximumf %16, %17 : vector<16x1xf32>
    %19 = math.rsqrt %18 : vector<16x1xf32>
    %20 = vector.broadcast %19 : vector<16x1xf32> to vector<16x32xf32>
    %21 = arith.mulf %5, %20 : vector<16x32xf32>
    %cst_7 = arith.constant dense<0.000000e+00> : vector<16x16xf32>
    %22 = tpu.matmul %13, %21, %cst_7 {dimension_numbers = #tpu.dot_dimension_numbers<[1], [1], [0], [0], [0, 0, 1, 0], [], []>} : vector<16x32xf32>, vector<16x32xf32>, vector<16x16xf32> -> vector<16x16xf32>
    %cst_8 = arith.constant 2.000000e+00 : f32
    %23 = vector.broadcast %cst_8 : f32 to vector<16x16xf32>
    %24 = arith.mulf %23, %22 : vector<16x16xf32>
    %cst_9 = arith.constant 2.000000e+00 : f32
    %25 = vector.broadcast %cst_9 : f32 to vector<16x16xf32>
    %26 = arith.subf %25, %24 : vector<16x16xf32>
    %27 = tpu.iota {dimensions = array<i32: 0>} : vector<16x16xi32>
    %28 = vector.broadcast %3 : i32 to vector<16x16xi32>
    %29 = arith.addi %28, %27 : vector<16x16xi32>
    %30 = tpu.iota {dimensions = array<i32: 1>} : vector<16x16xi32>
    %31 = arith.cmpi ne, %29, %30 : vector<16x16xi32>
    %32 = arith.extui %31 : vector<16x16xi1> to vector<16x16xi32>
    %33 = arith.sitofp %32 : vector<16x16xi32> to vector<16x16xf32>
    %cst_10 = arith.constant 0.000000e+00 : f32
    %34 = vector.broadcast %cst_10 : f32 to vector<16x16xf32>
    %35 = arith.maximumf %26, %34 : vector<16x16xf32>
    %36 = arith.mulf %35, %33 : vector<16x16xf32>
    %37 = math.sqrt %36 : vector<16x16xf32>
    %cst_11 = arith.constant dense<0.000000e+00> : vector<16xf32>
    %38 = vector.multi_reduction <add>, %37, %cst_11 [1] : vector<16x16xf32> to vector<16xf32>
    %39 = vector.shape_cast %38 : vector<16xf32> to vector<16x1xf32>
    %cst_12 = arith.constant 1.600000e+01 : f32
    %40 = vector.broadcast %cst_12 : f32 to vector<16x1xf32>
    %41 = arith.divf %39, %40 : vector<16x1xf32>
    %42 = vector.broadcast %41 : vector<16x1xf32> to vector<16x16xf32>
    %43 = arith.divf %37, %42 : vector<16x16xf32>
    %c0_13 = arith.constant 0 : index
    %c0_14 = arith.constant 0 : index
    %44 = vector.load %arg3[%c0_13, %c0_14] : memref<16x16xf32, #tpu.memory_space<vmem>>, vector<16x16xf32>
    %45 = arith.mulf %43, %43 : vector<16x16xf32>
    %46 = arith.mulf %45, %44 : vector<16x16xf32>
    %cst_15 = arith.constant 1.000000e+00 : f32
    %47 = vector.broadcast %cst_15 : f32 to vector<16x16xf32>
    %48 = arith.subf %47, %43 : vector<16x16xf32>
    %cst_16 = arith.constant 0.000000e+00 : f32
    %49 = vector.broadcast %cst_16 : f32 to vector<16x16xf32>
    %50 = arith.maximumf %48, %49 : vector<16x16xf32>
    %51 = arith.mulf %50, %50 : vector<16x16xf32>
    %cst_17 = arith.constant 1.000000e+00 : f32
    %52 = vector.broadcast %cst_17 : f32 to vector<16x16xf32>
    %53 = arith.subf %52, %44 : vector<16x16xf32>
    %54 = arith.mulf %51, %53 : vector<16x16xf32>
    %55 = arith.mulf %54, %33 : vector<16x16xf32>
    %56 = vector.shape_cast %46 : vector<16x16xf32> to vector<1x16x16xf32>
    %cst_18 = arith.constant dense<0.000000e+00> : vector<1xf32>
    %57 = vector.multi_reduction <add>, %56, %cst_18 [1, 2] : vector<1x16x16xf32> to vector<1xf32>
    %58 = vector.shape_cast %57 : vector<1xf32> to vector<1x1x1xf32>
    %59 = vector.extract %58[0, 0, 0] : f32 from vector<1x1x1xf32>
    %60 = vector.shape_cast %55 : vector<16x16xf32> to vector<1x16x16xf32>
    %cst_19 = arith.constant dense<0.000000e+00> : vector<1xf32>
    %61 = vector.multi_reduction <add>, %60, %cst_19 [1, 2] : vector<1x16x16xf32> to vector<1xf32>
    %62 = vector.shape_cast %61 : vector<1xf32> to vector<1x1x1xf32>
    %63 = vector.extract %62[0, 0, 0] : f32 from vector<1x1x1xf32>
    %64 = arith.addf %59, %63 : f32
    %cst_20 = arith.constant 0.00416666688 : f32
    %65 = arith.mulf %64, %cst_20 : f32
    %c0_21 = arith.constant 0 : index
    %c0_22 = arith.constant 0 : index
    %66 = vector.load %arg4[%c0_21, %c0_22] : memref<1x1xf32, #tpu.memory_space<vmem>>, vector<1x1xf32>
    %67 = vector.broadcast %65 : f32 to vector<1x1xf32>
    %68 = arith.addf %66, %67 : vector<1x1xf32>
    %c0_23 = arith.constant 0 : index
    %c0_24 = arith.constant 0 : index
    %69 = vector.load %arg4[%c0_23, %c0_24] : memref<1x1xf32, #tpu.memory_space<vmem>>, vector<1x1xf32>
    tpu.vector_store %arg4[%c0_23, %c0_24], %68 {strides = array<i32>} : memref<1x1xf32, #tpu.memory_space<vmem>>, vector<1x1xf32>,
    return
  }
  func.func @transform_0(%arg0: i32) -> (i32, i32) {
    %c0_i32 = arith.constant 0 : i32
    %c0_i32_0 = arith.constant 0 : i32
    return %arg0, %c0_i32 : i32, i32
  }
  func.func @transform_1(%arg0: i32) -> (i32, i32) {
    %c0_i32 = arith.constant 0 : i32
    %c0_i32_0 = arith.constant 0 : i32
    %c0_i32_1 = arith.constant 0 : i32
    return %c0_i32, %c0_i32_0 : i32, i32
  }
  func.func @transform_2(%arg0: i32) -> (i32, i32) {
    %c0_i32 = arith.constant 0 : i32
    %c0_i32_0 = arith.constant 0 : i32
    return %arg0, %c0_i32 : i32, i32
  }
  func.func @transform_3(%arg0: i32) -> (i32, i32) {
    %c0_i32 = arith.constant 0 : i32
    %c0_i32_0 = arith.constant 0 : i32
    %c0_i32_1 = arith.constant 0 : i32
    return %c0_i32, %c0_i32_0 : i32, i32
  }
}

module attributes {stable_mosaic.version = 11 : i64} {
  func.func @_weights_kernel(%arg0: i32, %arg1: memref<16x16xf32, #tpu.memory_space<vmem>>, %arg2: memref<16x4xi32, #tpu.memory_space<vmem>>, %arg3: memref<16x16xf32, #tpu.memory_space<vmem>>) attributes {dimension_semantics = [#tpu.dimension_semantics<arbitrary>], iteration_bounds = array<i64: 1>, scalar_prefetch = 0 : i64, scratch_operands = 0 : i64, tpu.core_type = #tpu.core_type<tc>, window_params = [{pipeline_mode = #tpu.pipeline_mode<synchronous>, transform_indices = @transform_0, window_bounds = array<i64: 16, 16>}, {pipeline_mode = #tpu.pipeline_mode<synchronous>, transform_indices = @transform_1, window_bounds = array<i64: 16, 4>}, {pipeline_mode = #tpu.pipeline_mode<synchronous>, transform_indices = @transform_2, window_bounds = array<i64: 16, 16>}]} {
    %c0 = arith.constant 0 : index
    %c0_0 = arith.constant 0 : index
    %0 = vector.load %arg1[%c0, %c0_0] : memref<16x16xf32, #tpu.memory_space<vmem>>, vector<16x16xf32>
    %c0_1 = arith.constant 0 : index
    %c0_2 = arith.constant 0 : index
    %1 = vector.load %arg2[%c0_1, %c0_2] : memref<16x4xi32, #tpu.memory_space<vmem>>, vector<16x4xi32>
    %2 = tpu.iota {dimensions = array<i32: 1>} : vector<16x16xi32>
    %3 = vector.extract_strided_slice %1 {offsets = [0, 0], sizes = [16, 1], strides = [1, 1]} : vector<16x4xi32> to vector<16x1xi32>
    %4 = vector.broadcast %3 : vector<16x1xi32> to vector<16x16xi32>
    %5 = arith.cmpi eq, %2, %4 : vector<16x16xi32>
    %6 = vector.extract_strided_slice %1 {offsets = [0, 1], sizes = [16, 1], strides = [1, 1]} : vector<16x4xi32> to vector<16x1xi32>
    %7 = vector.broadcast %6 : vector<16x1xi32> to vector<16x16xi32>
    %8 = arith.cmpi eq, %2, %7 : vector<16x16xi32>
    %9 = arith.ori %5, %8 : vector<16x16xi1>
    %10 = vector.extract_strided_slice %1 {offsets = [0, 2], sizes = [16, 1], strides = [1, 1]} : vector<16x4xi32> to vector<16x1xi32>
    %11 = vector.broadcast %10 : vector<16x1xi32> to vector<16x16xi32>
    %12 = arith.cmpi eq, %2, %11 : vector<16x16xi32>
    %13 = arith.ori %9, %12 : vector<16x16xi1>
    %14 = vector.extract_strided_slice %1 {offsets = [0, 3], sizes = [16, 1], strides = [1, 1]} : vector<16x4xi32> to vector<16x1xi32>
    %15 = vector.broadcast %14 : vector<16x1xi32> to vector<16x16xi32>
    %16 = arith.cmpi eq, %2, %15 : vector<16x16xi32>
    %17 = arith.ori %13, %16 : vector<16x16xi1>
    %18 = arith.extui %17 : vector<16x16xi1> to vector<16x16xi32>
    %19 = arith.sitofp %18 : vector<16x16xi32> to vector<16x16xf32>
    %20 = tpu.transpose %19, [1, 0] : vector<16x16xf32> -> vector<16x16xf32>
    %21 = arith.mulf %19, %20 : vector<16x16xf32>
    %22 = arith.truncf %21 : vector<16x16xf32> to vector<16x16xbf16>
    %cst = arith.constant dense<0.000000e+00> : vector<16x16xf32>
    %23 = tpu.matmul %22, %22, %cst {dimension_numbers = #tpu.dot_dimension_numbers<[1], [0], [0], [1], [0, 0, 1, 1], [], []>} : vector<16x16xbf16>, vector<16x16xbf16>, vector<16x16xf32> -> vector<16x16xf32>
    %cst_3 = arith.constant dense<0.000000e+00> : vector<16xf32>
    %24 = vector.multi_reduction <add>, %21, %cst_3 [1] : vector<16x16xf32> to vector<16xf32>
    %25 = vector.shape_cast %24 : vector<16xf32> to vector<16x1xf32>
    %cst_4 = arith.constant 0.000000e+00 : f32
    %26 = vector.broadcast %cst_4 : f32 to vector<16x1xf32>
    %27 = arith.cmpf ogt, %25, %26 : vector<16x1xf32>
    %28 = arith.mulf %21, %23 : vector<16x16xf32>
    %cst_5 = arith.constant 1.000000e+00 : f32
    %29 = vector.broadcast %cst_5 : f32 to vector<16x1xf32>
    %30 = arith.maximumf %25, %29 : vector<16x1xf32>
    %31 = vector.broadcast %30 : vector<16x1xf32> to vector<16x16xf32>
    %32 = arith.divf %28, %31 : vector<16x16xf32>
    %cst_6 = arith.constant 0.000000e+00 : f32
    %33 = vector.shape_cast %27 : vector<16x1xi1> to vector<16x1xi1>
    %34 = vector.broadcast %33 : vector<16x1xi1> to vector<16x16xi1>
    %35 = vector.broadcast %cst_6 : f32 to vector<16x16xf32>
    %36 = arith.select %34, %32, %35 : vector<16x16xi1>, vector<16x16xf32>
    %37 = vector.extract_strided_slice %1 {offsets = [0, 0], sizes = [16, 1], strides = [1, 1]} : vector<16x4xi32> to vector<16x1xi32>
    %38 = vector.broadcast %37 : vector<16x1xi32> to vector<16x16xi32>
    %39 = arith.cmpi eq, %2, %38 : vector<16x16xi32>
    %40 = arith.extui %39 : vector<16x16xi1> to vector<16x16xi32>
    %41 = arith.sitofp %40 : vector<16x16xi32> to vector<16x16xf32>
    %42 = vector.extract_strided_slice %1 {offsets = [0, 1], sizes = [16, 1], strides = [1, 1]} : vector<16x4xi32> to vector<16x1xi32>
    %43 = vector.broadcast %42 : vector<16x1xi32> to vector<16x16xi32>
    %44 = arith.cmpi eq, %2, %43 : vector<16x16xi32>
    %45 = arith.extui %44 : vector<16x16xi1> to vector<16x16xi32>
    %46 = arith.sitofp %45 : vector<16x16xi32> to vector<16x16xf32>
    %47 = arith.addf %41, %46 : vector<16x16xf32>
    %cst_7 = arith.constant dense<0.000000e+00> : vector<16x16xf32>
    %48 = tpu.matmul %47, %36, %cst_7 {dimension_numbers = #tpu.dot_dimension_numbers<[1], [0], [0], [1], [0, 0, 1, 1], [], []>} : vector<16x16xf32>, vector<16x16xf32>, vector<16x16xf32> -> vector<16x16xf32>
    %cst_8 = arith.constant 5.000000e-01 : f32
    %49 = vector.broadcast %cst_8 : f32 to vector<16x16xf32>
    %50 = arith.mulf %48, %49 : vector<16x16xf32>
    %51 = tpu.transpose %50, [1, 0] : vector<16x16xf32> -> vector<16x16xf32>
    %52 = arith.addf %50, %51 : vector<16x16xf32>
    %cst_9 = arith.constant 5.000000e-01 : f32
    %53 = vector.broadcast %cst_9 : f32 to vector<16x16xf32>
    %54 = arith.mulf %52, %53 : vector<16x16xf32>
    %55 = arith.addf %0, %54 : vector<16x16xf32>
    %cst_10 = arith.constant 5.000000e-01 : f32
    %56 = vector.broadcast %cst_10 : f32 to vector<16x16xf32>
    %57 = arith.mulf %55, %56 : vector<16x16xf32>
    %c0_11 = arith.constant 0 : index
    %c0_12 = arith.constant 0 : index
    %58 = vector.load %arg3[%c0_11, %c0_12] : memref<16x16xf32, #tpu.memory_space<vmem>>, vector<16x16xf32>
    tpu.vector_store %arg3[%c0_11, %c0_12], %57 {strides = array<i32>} : memref<16x16xf32, #tpu.memory_space<vmem>>, vector<16x16xf32>,
    return
  }
  func.func @transform_0(%arg0: i32) -> (i32, i32) {
    %c0_i32 = arith.constant 0 : i32
    %c0_i32_0 = arith.constant 0 : i32
    %c0_i32_1 = arith.constant 0 : i32
    return %c0_i32, %c0_i32_0 : i32, i32
  }
  func.func @transform_1(%arg0: i32) -> (i32, i32) {
    %c0_i32 = arith.constant 0 : i32
    %c0_i32_0 = arith.constant 0 : i32
    %c0_i32_1 = arith.constant 0 : i32
    return %c0_i32, %c0_i32_0 : i32, i32
  }
  func.func @transform_2(%arg0: i32) -> (i32, i32) {
    %c0_i32 = arith.constant 0 : i32
    %c0_i32_0 = arith.constant 0 : i32
    %c0_i32_1 = arith.constant 0 : i32
    return %c0_i32, %c0_i32_0 : i32, i32
  }
}

module attributes {stable_mosaic.version = 11 : i64} {
  func.func @_kl_loss_kernel(%arg0: i32, %arg1: memref<16x32xf32, #tpu.memory_space<vmem>>, %arg2: memref<16x32xf32, #tpu.memory_space<vmem>>, %arg3: memref<16x32xf32, #tpu.memory_space<vmem>>, %arg4: memref<16x32xf32, #tpu.memory_space<vmem>>, %arg5: memref<1x1xf32, #tpu.memory_space<vmem>>) attributes {dimension_semantics = [#tpu.dimension_semantics<arbitrary>], iteration_bounds = array<i64: 1>, scalar_prefetch = 0 : i64, scratch_operands = 0 : i64, tpu.core_type = #tpu.core_type<tc>, window_params = [{transform_indices = @transform_0, window_bounds = array<i64: 16, 32>}, {pipeline_mode = #tpu.pipeline_mode<synchronous>, transform_indices = @transform_1, window_bounds = array<i64: 16, 32>}, {transform_indices = @transform_2, window_bounds = array<i64: 16, 32>}, {pipeline_mode = #tpu.pipeline_mode<synchronous>, transform_indices = @transform_3, window_bounds = array<i64: 16, 32>}, {pipeline_mode = #tpu.pipeline_mode<synchronous>, transform_indices = @transform_4, window_bounds = array<i64: 1, 1>}]} {
    %c0_i32 = arith.constant 0 : i32
    %0 = arith.cmpi eq, %arg0, %c0_i32 : i32
    %1 = arith.extui %0 : i1 to i32
    %c0_i32_0 = arith.constant 0 : i32
    %2 = arith.cmpi ne, %1, %c0_i32_0 : i32
    scf.if %2 {
      %cst_39 = arith.constant 0.000000e+00 : f32
      %121 = vector.broadcast %cst_39 : f32 to vector<1x1xf32>
      %c0_40 = arith.constant 0 : index
      %c0_41 = arith.constant 0 : index
      %122 = vector.load %arg5[%c0_40, %c0_41] : memref<1x1xf32, #tpu.memory_space<vmem>>, vector<1x1xf32>
      tpu.vector_store %arg5[%c0_40, %c0_41], %121 {strides = array<i32>} : memref<1x1xf32, #tpu.memory_space<vmem>>, vector<1x1xf32>,
    } else {
    }
    %c16_i32 = arith.constant 16 : i32
    %3 = arith.muli %arg0, %c16_i32 : i32
    %c0 = arith.constant 0 : index
    %c0_1 = arith.constant 0 : index
    %4 = vector.load %arg1[%c0, %c0_1] : memref<16x32xf32, #tpu.memory_space<vmem>>, vector<16x32xf32>
    %c0_2 = arith.constant 0 : index
    %c0_3 = arith.constant 0 : index
    %5 = vector.load %arg2[%c0_2, %c0_3] : memref<16x32xf32, #tpu.memory_space<vmem>>, vector<16x32xf32>
    %6 = arith.mulf %4, %4 : vector<16x32xf32>
    %cst = arith.constant dense<0.000000e+00> : vector<16xf32>
    %7 = vector.multi_reduction <add>, %6, %cst [1] : vector<16x32xf32> to vector<16xf32>
    %8 = vector.shape_cast %7 : vector<16xf32> to vector<16x1xf32>
    %cst_4 = arith.constant 1.000000e-24 : f32
    %9 = vector.broadcast %cst_4 : f32 to vector<16x1xf32>
    %10 = arith.maximumf %8, %9 : vector<16x1xf32>
    %11 = math.rsqrt %10 : vector<16x1xf32>
    %12 = vector.broadcast %11 : vector<16x1xf32> to vector<16x32xf32>
    %13 = arith.mulf %4, %12 : vector<16x32xf32>
    %14 = arith.mulf %5, %5 : vector<16x32xf32>
    %cst_5 = arith.constant dense<0.000000e+00> : vector<16xf32>
    %15 = vector.multi_reduction <add>, %14, %cst_5 [1] : vector<16x32xf32> to vector<16xf32>
    %16 = vector.shape_cast %15 : vector<16xf32> to vector<16x1xf32>
    %cst_6 = arith.constant 1.000000e-24 : f32
    %17 = vector.broadcast %cst_6 : f32 to vector<16x1xf32>
    %18 = arith.maximumf %16, %17 : vector<16x1xf32>
    %19 = math.rsqrt %18 : vector<16x1xf32>
    %20 = vector.broadcast %19 : vector<16x1xf32> to vector<16x32xf32>
    %21 = arith.mulf %5, %20 : vector<16x32xf32>
    %cst_7 = arith.constant dense<0.000000e+00> : vector<16x16xf32>
    %22 = tpu.matmul %13, %21, %cst_7 {dimension_numbers = #tpu.dot_dimension_numbers<[1], [1], [0], [0], [0, 0, 1, 0], [], []>} : vector<16x32xf32>, vector<16x32xf32>, vector<16x16xf32> -> vector<16x16xf32>
    %cst_8 = arith.constant 2.000000e+00 : f32
    %23 = vector.broadcast %cst_8 : f32 to vector<16x16xf32>
    %24 = arith.mulf %23, %22 : vector<16x16xf32>
    %cst_9 = arith.constant 2.000000e+00 : f32
    %25 = vector.broadcast %cst_9 : f32 to vector<16x16xf32>
    %26 = arith.subf %25, %24 : vector<16x16xf32>
    %27 = tpu.iota {dimensions = array<i32: 0>} : vector<16x16xi32>
    %28 = vector.broadcast %3 : i32 to vector<16x16xi32>
    %29 = arith.addi %28, %27 : vector<16x16xi32>
    %30 = tpu.iota {dimensions = array<i32: 1>} : vector<16x16xi32>
    %31 = arith.cmpi ne, %29, %30 : vector<16x16xi32>
    %32 = arith.extui %31 : vector<16x16xi1> to vector<16x16xi32>
    %33 = arith.sitofp %32 : vector<16x16xi32> to vector<16x16xf32>
    %cst_10 = arith.constant 0.000000e+00 : f32
    %34 = vector.broadcast %cst_10 : f32 to vector<16x16xf32>
    %35 = arith.maximumf %26, %34 : vector<16x16xf32>
    %36 = arith.mulf %35, %33 : vector<16x16xf32>
    %c0_11 = arith.constant 0 : index
    %c0_12 = arith.constant 0 : index
    %37 = vector.load %arg3[%c0_11, %c0_12] : memref<16x32xf32, #tpu.memory_space<vmem>>, vector<16x32xf32>
    %c0_13 = arith.constant 0 : index
    %c0_14 = arith.constant 0 : index
    %38 = vector.load %arg4[%c0_13, %c0_14] : memref<16x32xf32, #tpu.memory_space<vmem>>, vector<16x32xf32>
    %39 = arith.mulf %37, %37 : vector<16x32xf32>
    %cst_15 = arith.constant dense<0.000000e+00> : vector<16xf32>
    %40 = vector.multi_reduction <add>, %39, %cst_15 [1] : vector<16x32xf32> to vector<16xf32>
    %41 = vector.shape_cast %40 : vector<16xf32> to vector<16x1xf32>
    %cst_16 = arith.constant 1.000000e-24 : f32
    %42 = vector.broadcast %cst_16 : f32 to vector<16x1xf32>
    %43 = arith.maximumf %41, %42 : vector<16x1xf32>
    %44 = math.rsqrt %43 : vector<16x1xf32>
    %45 = vector.broadcast %44 : vector<16x1xf32> to vector<16x32xf32>
    %46 = arith.mulf %37, %45 : vector<16x32xf32>
    %47 = arith.mulf %38, %38 : vector<16x32xf32>
    %cst_17 = arith.constant dense<0.000000e+00> : vector<16xf32>
    %48 = vector.multi_reduction <add>, %47, %cst_17 [1] : vector<16x32xf32> to vector<16xf32>
    %49 = vector.shape_cast %48 : vector<16xf32> to vector<16x1xf32>
    %cst_18 = arith.constant 1.000000e-24 : f32
    %50 = vector.broadcast %cst_18 : f32 to vector<16x1xf32>
    %51 = arith.maximumf %49, %50 : vector<16x1xf32>
    %52 = math.rsqrt %51 : vector<16x1xf32>
    %53 = vector.broadcast %52 : vector<16x1xf32> to vector<16x32xf32>
    %54 = arith.mulf %38, %53 : vector<16x32xf32>
    %cst_19 = arith.constant dense<0.000000e+00> : vector<16x16xf32>
    %55 = tpu.matmul %46, %54, %cst_19 {dimension_numbers = #tpu.dot_dimension_numbers<[1], [1], [0], [0], [0, 0, 1, 0], [], []>} : vector<16x32xf32>, vector<16x32xf32>, vector<16x16xf32> -> vector<16x16xf32>
    %cst_20 = arith.constant 2.000000e+00 : f32
    %56 = vector.broadcast %cst_20 : f32 to vector<16x16xf32>
    %57 = arith.mulf %56, %55 : vector<16x16xf32>
    %cst_21 = arith.constant 2.000000e+00 : f32
    %58 = vector.broadcast %cst_21 : f32 to vector<16x16xf32>
    %59 = arith.subf %58, %57 : vector<16x16xf32>
    %60 = tpu.iota {dimensions = array<i32: 0>} : vector<16x16xi32>
    %61 = vector.broadcast %3 : i32 to vector<16x16xi32>
    %62 = arith.addi %61, %60 : vector<16x16xi32>
    %63 = tpu.iota {dimensions = array<i32: 1>} : vector<16x16xi32>
    %64 = arith.cmpi ne, %62, %63 : vector<16x16xi32>
    %65 = arith.extui %64 : vector<16x16xi1> to vector<16x16xi32>
    %66 = arith.sitofp %65 : vector<16x16xi32> to vector<16x16xf32>
    %cst_22 = arith.constant 0.000000e+00 : f32
    %67 = vector.broadcast %cst_22 : f32 to vector<16x16xf32>
    %68 = arith.maximumf %59, %67 : vector<16x16xf32>
    %69 = arith.mulf %68, %66 : vector<16x16xf32>
    %70 = math.sqrt %36 : vector<16x16xf32>
    %71 = math.sqrt %69 : vector<16x16xf32>
    %cst_23 = arith.constant dense<0.000000e+00> : vector<16xf32>
    %72 = vector.multi_reduction <add>, %70, %cst_23 [1] : vector<16x16xf32> to vector<16xf32>
    %73 = vector.shape_cast %72 : vector<16xf32> to vector<16x1xf32>
    %cst_24 = arith.constant 1.600000e+01 : f32
    %74 = vector.broadcast %cst_24 : f32 to vector<16x1xf32>
    %75 = arith.divf %73, %74 : vector<16x1xf32>
    %76 = vector.broadcast %75 : vector<16x1xf32> to vector<16x16xf32>
    %77 = arith.divf %70, %76 : vector<16x16xf32>
    %cst_25 = arith.constant dense<0.000000e+00> : vector<16xf32>
    %78 = vector.multi_reduction <add>, %71, %cst_25 [1] : vector<16x16xf32> to vector<16xf32>
    %79 = vector.shape_cast %78 : vector<16xf32> to vector<16x1xf32>
    %cst_26 = arith.constant 1.600000e+01 : f32
    %80 = vector.broadcast %cst_26 : f32 to vector<16x1xf32>
    %81 = arith.divf %79, %80 : vector<16x1xf32>
    %82 = vector.broadcast %81 : vector<16x1xf32> to vector<16x16xf32>
    %83 = arith.divf %71, %82 : vector<16x16xf32>
    %cst_27 = arith.constant 0.000000e+00 : f32
    %84 = vector.broadcast %cst_27 : f32 to vector<16x16xf32>
    %85 = arith.subf %84, %77 : vector<16x16xf32>
    %cst_28 = arith.constant 0.000000e+00 : f32
    %86 = vector.broadcast %cst_28 : f32 to vector<16x16xf32>
    %87 = arith.subf %86, %83 : vector<16x16xf32>
    %cst_29 = arith.constant dense<0xFF800000> : vector<16xf32>
    %88 = vector.multi_reduction <maximumf>, %85, %cst_29 [1] : vector<16x16xf32> to vector<16xf32>
    %89 = vector.shape_cast %88 : vector<16xf32> to vector<16x1xf32>
    %90 = vector.broadcast %89 : vector<16x1xf32> to vector<16x16xf32>
    %91 = arith.subf %85, %90 : vector<16x16xf32>
    %92 = math.exp %91 : vector<16x16xf32>
    %cst_30 = arith.constant dense<0.000000e+00> : vector<16xf32>
    %93 = vector.multi_reduction <add>, %92, %cst_30 [1] : vector<16x16xf32> to vector<16xf32>
    %94 = vector.shape_cast %93 : vector<16xf32> to vector<16x1xf32>
    %95 = math.log %94 : vector<16x1xf32>
    %96 = vector.broadcast %95 : vector<16x1xf32> to vector<16x16xf32>
    %97 = arith.subf %91, %96 : vector<16x16xf32>
    %cst_31 = arith.constant dense<0xFF800000> : vector<16xf32>
    %98 = vector.multi_reduction <maximumf>, %87, %cst_31 [1] : vector<16x16xf32> to vector<16xf32>
    %99 = vector.shape_cast %98 : vector<16xf32> to vector<16x1xf32>
    %100 = vector.broadcast %99 : vector<16x1xf32> to vector<16x16xf32>
    %101 = arith.subf %87, %100 : vector<16x16xf32>
    %102 = math.exp %101 : vector<16x16xf32>
    %cst_32 = arith.constant dense<0.000000e+00> : vector<16xf32>
    %103 = vector.multi_reduction <add>, %102, %cst_32 [1] : vector<16x16xf32> to vector<16xf32>
    %104 = vector.shape_cast %103 : vector<16xf32> to vector<16x1xf32>
    %105 = vector.broadcast %104 : vector<16x1xf32> to vector<16x16xf32>
    %106 = arith.divf %102, %105 : vector<16x16xf32>
    %107 = math.log %104 : vector<16x1xf32>
    %108 = vector.broadcast %107 : vector<16x1xf32> to vector<16x16xf32>
    %109 = arith.subf %101, %108 : vector<16x16xf32>
    %110 = arith.subf %109, %97 : vector<16x16xf32>
    %111 = arith.mulf %106, %110 : vector<16x16xf32>
    %112 = vector.shape_cast %111 : vector<16x16xf32> to vector<1x16x16xf32>
    %cst_33 = arith.constant dense<0.000000e+00> : vector<1xf32>
    %113 = vector.multi_reduction <add>, %112, %cst_33 [1, 2] : vector<1x16x16xf32> to vector<1xf32>
    %114 = vector.shape_cast %113 : vector<1xf32> to vector<1x1x1xf32>
    %115 = vector.extract %114[0, 0, 0] : f32 from vector<1x1x1xf32>
    %cst_34 = arith.constant 6.250000e-02 : f32
    %116 = arith.mulf %115, %cst_34 : f32
    %c0_35 = arith.constant 0 : index
    %c0_36 = arith.constant 0 : index
    %117 = vector.load %arg5[%c0_35, %c0_36] : memref<1x1xf32, #tpu.memory_space<vmem>>, vector<1x1xf32>
    %118 = vector.broadcast %116 : f32 to vector<1x1xf32>
    %119 = arith.addf %117, %118 : vector<1x1xf32>
    %c0_37 = arith.constant 0 : index
    %c0_38 = arith.constant 0 : index
    %120 = vector.load %arg5[%c0_37, %c0_38] : memref<1x1xf32, #tpu.memory_space<vmem>>, vector<1x1xf32>
    tpu.vector_store %arg5[%c0_37, %c0_38], %119 {strides = array<i32>} : memref<1x1xf32, #tpu.memory_space<vmem>>, vector<1x1xf32>,
    return
  }
  func.func @transform_0(%arg0: i32) -> (i32, i32) {
    %c0_i32 = arith.constant 0 : i32
    %c0_i32_0 = arith.constant 0 : i32
    return %arg0, %c0_i32 : i32, i32
  }
  func.func @transform_1(%arg0: i32) -> (i32, i32) {
    %c0_i32 = arith.constant 0 : i32
    %c0_i32_0 = arith.constant 0 : i32
    %c0_i32_1 = arith.constant 0 : i32
    return %c0_i32, %c0_i32_0 : i32, i32
  }
  func.func @transform_2(%arg0: i32) -> (i32, i32) {
    %c0_i32 = arith.constant 0 : i32
    %c0_i32_0 = arith.constant 0 : i32
    return %arg0, %c0_i32 : i32, i32
  }
  func.func @transform_3(%arg0: i32) -> (i32, i32) {
    %c0_i32 = arith.constant 0 : i32
    %c0_i32_0 = arith.constant 0 : i32
    %c0_i32_1 = arith.constant 0 : i32
    return %c0_i32, %c0_i32_0 : i32, i32
  }
  func.func @transform_4(%arg0: i32) -> (i32, i32) {
    %c0_i32 = arith.constant 0 : i32
    %c0_i32_0 = arith.constant 0 : i32
    %c0_i32_1 = arith.constant 0 : i32
    return %c0_i32, %c0_i32_0 : i32, i32
  }
}

</mosaic_0001>

<llo_original>
// kernel: stml_loss.6
$region0: #{stml_loss.6}
  #allocation0 [shape = 'u32[]', space=smem, size = 0x4, offset = 0x4, fixed_abs, tag = 'smem constant byte address 0x4 - core index']
  #allocation1 [shape = 'u32[144,128]{1,0:T(1,128)}', space=vmem, size = 0x12000, scoped, tag = 'internal scratch']
  %s0 = inlined_call_operand.vmem [shape: f32[16,16], index: 0, kind: input, shape index: {}]
  %s1 = inlined_call_operand.vmem [shape: s32[16,4], index: 1, kind: input, shape index: {}]
  %s2 = inlined_call_operand.vmem [shape: f32[16,16], index: 2, kind: output, shape index: {}]
  %s3 = sld [smem:[#allocation0]]
  $region18: #{stml_loss.6} parent=0
    _
  %s5 = ssub.s32 1, %s3
  %s6 = scalar_select 0, %s5, %s3
  // Predicated region
  $region2: #{stml_loss.6} parent=0 // pred_check
    _
  $region3: #{stml_loss.6} parent=0 // pred_check_branch
    %8 = sbr.rel (0) target = $region5
  $region4: #{stml_loss.6} parent=0 // pred_region
    _
  $region5: #{stml_loss.6} parent=0 // pred_fallthru
    _
  // Predicated region
  $region6: #{stml_loss.6} parent=0 // pred_check
    _
  $region7: #{stml_loss.6} parent=0 // pred_check_branch
    %10 = sbr.rel (0) target = $region9
  $region8: #{stml_loss.6} parent=0 // pred_region
    _
  $region9: #{stml_loss.6} parent=0 // pred_fallthru
    _
  %v12 = vld [vmem:[%s0] sm:$0xff]
  %v13 = vld [vmem:[%s0 + $0x8] sm:$0xff]
  %v14 = vld [vmem:[%s1] sm:$0xff]
  %v15 = vld [vmem:[%s1 + $0x8] sm:$0xff]
  %v16 = vlaneseq
  %v17 = vand.u32 %v16, 127
  %18 = vset.pattern.permute.xlu0 0
  %19 = vperm.xlu0 %18, %v14
  %v20 = vpop.permute.xlu0 %19
  %21 = vset.pattern.permute.xlu0 0
  %22 = vperm.xlu0 %21, %v15
  %v23 = vpop.permute.xlu0 %22
  %vm24 = vcmp.eq.s32.totalorder %v17, %v20
  %vm25 = vcmp.eq.s32.totalorder %v17, %v23
  %26 = vset.pattern.permute.xlu0 1
  %27 = vperm.xlu0 %26, %v14
  %v28 = vpop.permute.xlu0 %27
  %29 = vset.pattern.permute.xlu0 1
  %30 = vperm.xlu0 %29, %v15
  %v31 = vpop.permute.xlu0 %30
  %vm32 = vcmp.eq.s32.totalorder %v17, %v28
  %vm33 = vcmp.eq.s32.totalorder %v17, %v31
  %vm34 = vmor %vm24, %vm32
  %vm35 = vmor %vm25, %vm33
  %36 = vset.pattern.permute.xlu0 2
  %37 = vperm.xlu0 %36, %v14
  %v38 = vpop.permute.xlu0 %37
  %39 = vset.pattern.permute.xlu0 2
  %40 = vperm.xlu0 %39, %v15
  %v41 = vpop.permute.xlu0 %40
  %vm42 = vcmp.eq.s32.totalorder %v17, %v38
  %vm43 = vcmp.eq.s32.totalorder %v17, %v41
  %vm44 = vmor %vm34, %vm42
  %vm45 = vmor %vm35, %vm43
  %46 = vset.pattern.permute.xlu0 3
  %47 = vperm.xlu0 %46, %v14
  %v48 = vpop.permute.xlu0 %47
  %49 = vset.pattern.permute.xlu0 3
  %50 = vperm.xlu0 %49, %v15
  %v51 = vpop.permute.xlu0 %50
  %vm52 = vcmp.eq.s32.totalorder %v17, %v48
  %vm53 = vcmp.eq.s32.totalorder %v17, %v51
  %vm54 = vmor %vm44, %vm52
  %vm55 = vmor %vm45, %vm53
  %v56 = vsel %vm54, 1, 0
  %v57 = vsel %vm55, 1, 0
  %v58 = vcvt.s32.f32 %v56
  %v59 = vcvt.s32.f32 %v57
  %60 = vxpose.xlu0.b32.start [1/16] %v58, 128
  %61 = vxpose.xlu0.b32.cont [2/16] %v59, 128
  %62 = vxpose.xlu0.b32.cont [3/16] 0.0, 128
  %63 = vxpose.xlu0.b32.cont [4/16] 0.0, 128
  %64 = vxpose.xlu0.b32.cont [5/16] 0.0, 128
  %65 = vxpose.xlu0.b32.cont [6/16] 0.0, 128
  %66 = vxpose.xlu0.b32.cont [7/16] 0.0, 128
  %67 = vxpose.xlu0.b32.cont [8/16] 0.0, 128
  %68 = vxpose.xlu0.b32.cont [9/16] 0.0, 128
  %69 = vxpose.xlu0.b32.cont [10/16] 0.0, 128
  %70 = vxpose.xlu0.b32.cont [11/16] 0.0, 128
  %71 = vxpose.xlu0.b32.cont [12/16] 0.0, 128
  %72 = vxpose.xlu0.b32.cont [13/16] 0.0, 128
  %73 = vxpose.xlu0.b32.cont [14/16] 0.0, 128
  %74 = vxpose.xlu0.b32.cont [15/16] 0.0, 128
  %75 = vxpose.xlu0.b32.end [16/16] 0.0, 128
  %v76 = vpop.trf.xlu0
  %v77 = vpop.trf.xlu0
  %v78 = vpop.trf.xlu0
  %v79 = vpop.trf.xlu0
  %v80 = vpop.trf.xlu0
  %v81 = vpop.trf.xlu0
  %v82 = vpop.trf.xlu0
  %v83 = vpop.trf.xlu0
  %v84 = vpop.trf.xlu0
  %v85 = vpop.trf.xlu0
  %v86 = vpop.trf.xlu0
  %v87 = vpop.trf.xlu0
  %v88 = vpop.trf.xlu0
  %v89 = vpop.trf.xlu0
  %v90 = vpop.trf.xlu0
  %v91 = vpop.trf.xlu0
  %v92 = vmul.f32 %v58, %v76
  %v93 = vmul.f32 %v59, %v77
  %v94 = vpack.c.bf16 %v93, %v92
  %vm95 = vcmask 130048
  %v97 = vsel %vm95, %v94, 0
  %99 = vmatprep.subr.bf16.mxu0 0
  %100 = vmatpush1.bf16.msra.mxu0 %v94
  %101 = vmatprep.subr.bf16.mxu0 0
  %102 = vmatpush1.bf16.msra.mxu0 0
  %103 = vmatprep.subr.bf16.mxu0 0
  %104 = vmatpush1.bf16.msra.mxu0 0
  %105 = vmatprep.subr.bf16.mxu0 0
  %106 = vmatpush1.bf16.msra.mxu0 0
  %107 = vmatprep.subr.bf16.mxu0 0
  %108 = vmatpush1.bf16.msra.mxu0 0
  %109 = vmatprep.subr.bf16.mxu0 0
  %110 = vmatpush1.bf16.msra.mxu0 0
  %111 = vmatprep.subr.bf16.mxu0 0
  %112 = vmatpush1.bf16.msra.mxu0 0
  %113 = vmatprep.subr.bf16.mxu0 0
  %114 = vmatpush1.bf16.msra.mxu0 0
  %115 = vmatprep.subr.bf16.mxu0 0
  %116 = vmatpush1.bf16.msra.mxu0 0
  %117 = vmatprep.subr.bf16.mxu0 0
  %118 = vmatpush1.bf16.msra.mxu0 0
  %119 = vmatprep.subr.bf16.mxu0 0
  %120 = vmatpush1.bf16.msra.mxu0 0
  %121 = vmatprep.subr.bf16.mxu0 0
  %122 = vmatpush1.bf16.msra.mxu0 0
  %123 = vmatprep.subr.bf16.mxu0 0
  %124 = vmatpush1.bf16.msra.mxu0 0
  %125 = vmatprep.subr.bf16.mxu0 0
  %126 = vmatpush1.bf16.msra.mxu0 0
  %127 = vmatprep.subr.bf16.mxu0 0
  %128 = vmatpush1.bf16.msra.mxu0 0
  %129 = vmatprep.subr.bf16.mxu0 0
  %130 = vmatpush1.bf16.msra.mxu0 0
  %131 = vmatprep.mubr.bf16.mxu0 0
  %132 = vmatmul.mubr.bf16.gmra.mrb[0].mxu0 %v97
  %v133 = vpop.f32.mrb[0].mxu0
  %v134 = vadd.f32 0.0, %v133
  %v135 = vpop.f32.mrb[0].mxu0
  %v136 = vpop.f32.mrb[0].mxu0
  %v137 = vadd.f32 0.0, %v136
  %v138 = vpop.f32.mrb[0].mxu0
  %139 = vdwg.mxu0
  %v140 = vsel %vm95, %v92, 0.0
  %141 = vadd.xlane.f32.xlu0 %v140
  %v142 = vpop.xlane.xlu0 %141
  %v143 = vsel %vm95, %v93, 0.0
  %144 = vadd.xlane.f32.xlu0 %v143
  %v145 = vpop.xlane.xlu0 %144
  %vm146 = vcmp.gt.f32.partialorder %v142, 0.0
  %vm147 = vcmp.gt.f32.partialorder %v145, 0.0
  %v148 = vmul.f32 %v92, %v134
  %v149 = vmul.f32 %v93, %v137
  %v150 = vmax.f32 %v142, 1.0
  %v151 = vmax.f32 %v145, 1.0
  %v152 = vrcp.pop %v150
  %v153 = vmul.f32 %v148, %v152
  %v154 = vrcp.pop %v151
  %v155 = vmul.f32 %v149, %v154
  %v156 = vsel %vm146, 1, 0
  %v157 = vsel %vm147, 1, 0
  %vm158 = vcmp.eq.s32.totalorder %v156, 1
  %vm159 = vcmp.eq.s32.totalorder %v157, 1
  %v160 = vsel %vm158, %v153, 0.0
  %v161 = vsel %vm159, %v155, 0.0
  %v162 = vsel %vm24, 1, 0
  %v163 = vsel %vm25, 1, 0
  %v164 = vcvt.s32.f32 %v162
  %v165 = vcvt.s32.f32 %v163
  %v166 = vsel %vm32, 1, 0
  %v167 = vsel %vm33, 1, 0
  %v168 = vcvt.s32.f32 %v166
  %v169 = vcvt.s32.f32 %v167
  %v170 = vadd.f32 %v164, %v168
  %v171 = vadd.f32 %v165, %v169
  %v173 = vsel %vm95, %v170, 0
  %v176 = vsel %vm95, %v171, 0
  %178 = vmatprep.subr.mxu0 0.0
  %179 = vmatpush1.msra.mxu0 %v160
  %180 = vmatprep.subr.mxu0 0.0
  %181 = vmatpush1.msra.mxu0 %v161
  %182 = vmatprep.subr.mxu0 0.0
  %183 = vmatpush1.msra.mxu0 0.0
  %184 = vmatprep.subr.mxu0 0.0
  %185 = vmatpush1.msra.mxu0 0.0
  %186 = vmatprep.subr.mxu0 0.0
  %187 = vmatpush1.msra.mxu0 0.0
  %188 = vmatprep.subr.mxu0 0.0
  %189 = vmatpush1.msra.mxu0 0.0
  %190 = vmatprep.subr.mxu0 0.0
  %191 = vmatpush1.msra.mxu0 0.0
  %192 = vmatprep.subr.mxu0 0.0
  %193 = vmatpush1.msra.mxu0 0.0
  %194 = vmatprep.subr.mxu0 0.0
  %195 = vmatpush1.msra.mxu0 0.0
  %196 = vmatprep.subr.mxu0 0.0
  %197 = vmatpush1.msra.mxu0 0.0
  %198 = vmatprep.subr.mxu0 0.0
  %199 = vmatpush1.msra.mxu0 0.0
  %200 = vmatprep.subr.mxu0 0.0
  %201 = vmatpush1.msra.mxu0 0.0
  %202 = vmatprep.subr.mxu0 0.0
  %203 = vmatpush1.msra.mxu0 0.0
  %204 = vmatprep.subr.mxu0 0.0
  %205 = vmatpush1.msra.mxu0 0.0
  %206 = vmatprep.subr.mxu0 0.0
  %207 = vmatpush1.msra.mxu0 0.0
  %208 = vmatprep.subr.mxu0 0.0
  %209 = vmatpush1.msra.mxu0 0.0
  %210 = vmatprep.subr.mxu0 0.0
  %211 = vmatpush1.msra.mxu0 0.0
  %212 = vmatprep.subr.mxu0 0.0
  %213 = vmatpush1.msra.mxu0 0.0
  %214 = vmatprep.subr.mxu0 0.0
  %215 = vmatpush1.msra.mxu0 0.0
  %216 = vmatprep.subr.mxu0 0.0
  %217 = vmatpush1.msra.mxu0 0.0
  %218 = vmatprep.subr.mxu0 0.0
  %219 = vmatpush1.msra.mxu0 0.0
  %220 = vmatprep.subr.mxu0 0.0
  %221 = vmatpush1.msra.mxu0 0.0
  %222 = vmatprep.subr.mxu0 0.0
  %223 = vmatpush1.msra.mxu0 0.0
  %224 = vmatprep.subr.mxu0 0.0
  %225 = vmatpush1.msra.mxu0 0.0
  %226 = vmatprep.subr.mxu0 0.0
  %227 = vmatpush1.msra.mxu0 0.0
  %228 = vmatprep.subr.mxu0 0.0
  %229 = vmatpush1.msra.mxu0 0.0
  %230 = vmatprep.subr.mxu0 0.0
  %231 = vmatpush1.msra.mxu0 0.0
  %232 = vmatprep.subr.mxu0 0.0
  %233 = vmatpush1.msra.mxu0 0.0
  %234 = vmatprep.subr.mxu0 0.0
  %235 = vmatpush1.msra.mxu0 0.0
  %236 = vmatprep.subr.mxu0 0.0
  %237 = vmatpush1.msra.mxu0 0.0
  %238 = vmatprep.subr.mxu0 0.0
  %239 = vmatpush1.msra.mxu0 0.0
  %240 = vmatprep.subr.mxu0 0.0
  %241 = vmatpush1.msra.mxu0 0.0
  %242 = vmatprep.mubr.f32.mxu0 0.0
  %243 = vmatmul.mubr.f32.gmra.mrb[0].mxu0 %v173
  %v244 = vpop.f32.mrb[0].mxu0
  %v245 = vadd.f32 0.0, %v244
  %v246 = vpop.f32.mrb[0].mxu0
  %247 = vmatprep.mubr.f32.mxu0 0.0
  %248 = vmatmul.mubr.f32.gmra.mrb[0].mxu0 %v176
  %v249 = vpop.f32.mrb[0].mxu0
  %v250 = vadd.f32 0.0, %v249
  %v251 = vpop.f32.mrb[0].mxu0
  %252 = vdwg.mxu0
  %v253 = vmul.f32 %v245, 0.5
  %v254 = vmul.f32 %v250, 0.5
  %255 = vxpose.xlu0.b32.start [1/16] %v253, 128
  %256 = vxpose.xlu0.b32.cont [2/16] %v254, 128
  %257 = vxpose.xlu0.b32.cont [3/16] 0.0, 128
  %258 = vxpose.xlu0.b32.cont [4/16] 0.0, 128
  %259 = vxpose.xlu0.b32.cont [5/16] 0.0, 128
  %260 = vxpose.xlu0.b32.cont [6/16] 0.0, 128
  %261 = vxpose.xlu0.b32.cont [7/16] 0.0, 128
  %262 = vxpose.xlu0.b32.cont [8/16] 0.0, 128
  %263 = vxpose.xlu0.b32.cont [9/16] 0.0, 128
  %264 = vxpose.xlu0.b32.cont [10/16] 0.0, 128
  %265 = vxpose.xlu0.b32.cont [11/16] 0.0, 128
  %266 = vxpose.xlu0.b32.cont [12/16] 0.0, 128
  %267 = vxpose.xlu0.b32.cont [13/16] 0.0, 128
  %268 = vxpose.xlu0.b32.cont [14/16] 0.0, 128
  %269 = vxpose.xlu0.b32.cont [15/16] 0.0, 128
  %270 = vxpose.xlu0.b32.end [16/16] 0.0, 128
  %v271 = vpop.trf.xlu0
  %v272 = vpop.trf.xlu0
  %v273 = vpop.trf.xlu0
  %v274 = vpop.trf.xlu0
  %v275 = vpop.trf.xlu0
  %v276 = vpop.trf.xlu0
  %v277 = vpop.trf.xlu0
  %v278 = vpop.trf.xlu0
  %v279 = vpop.trf.xlu0
  %v280 = vpop.trf.xlu0
  %v281 = vpop.trf.xlu0
  %v282 = vpop.trf.xlu0
  %v283 = vpop.trf.xlu0
  %v284 = vpop.trf.xlu0
  %v285 = vpop.trf.xlu0
  %v286 = vpop.trf.xlu0
  %v287 = vadd.f32 %v253, %v271
  %v288 = vadd.f32 %v254, %v272
  %v289 = vmul.f32 %v287, 0.5
  %v290 = vmul.f32 %v288, 0.5
  %v291 = vadd.f32 %v12, %v289
  %v292 = vadd.f32 %v13, %v290
  %v293 = vmul.f32 %v291, 0.5
  %v294 = vmul.f32 %v292, 0.5
  %295 = vst.msk [vmem:[%s2] sm:$0xff] %vm95, %v293
  %296 = vst.msk [vmem:[%s2 + $0x8] sm:$0xff] %vm95, %v294
  // Predicated region
  $region10: #{stml_loss.6} parent=0 // pred_check
    _
  $region11: #{stml_loss.6} parent=0 // pred_check_branch
    %298 = sbr.rel (0) target = $region13
  $region12: #{stml_loss.6} parent=0 // pred_region
    _
  $region13: #{stml_loss.6} parent=0 // pred_fallthru
    _
  // Predicated region
  $region14: #{stml_loss.6} parent=0 // pred_check
    _
  $region15: #{stml_loss.6} parent=0 // pred_check_branch
    %300 = sbr.rel (0) target = $region17
  $region16: #{stml_loss.6} parent=0 // pred_region
    _
  $region17: #{stml_loss.6} parent=0 // pred_fallthru
    _

// kernel: stml_loss.7
$region0: #{stml_loss.7}
  #allocation0 [shape = 'u32[]', space=smem, size = 0x4, offset = 0x4, fixed_abs, tag = 'smem constant byte address 0x4 - core index']
  #allocation1 [shape = 'u32[144,128]{1,0:T(1,128)}', space=vmem, size = 0x12000, scoped, tag = 'internal scratch']
  %s0 = inlined_call_operand.vmem [shape: f32[16,32], index: 0, kind: input, shape index: {}, may-alias: {0,1}]
  %s1 = inlined_call_operand.vmem [shape: f32[16,32], index: 1, kind: input, shape index: {}, may-alias: {0,1}]
  %s2 = inlined_call_operand.vmem [shape: f32[16,16], index: 2, kind: input, shape index: {}]
  %s3 = inlined_call_operand.hbm [shape: f32[1,1], index: 3, kind: output, shape index: {}]
  %s4 = sld [smem:[#allocation0]]
  $region26: #{stml_loss.7} parent=0
    _
  %s6 = ssub.s32 1, %s4
  %s7 = scalar_select 0, %s6, %s4
  $region1: #{stml_loss.7} parent=0
    #allocation2 [shape = 'u8[512]{0}', space=vmem, size = 0x400, scoped, tag = 'output window, operand 0, single buffered']
    #allocation3 [shape = 's32[1]{0}', space=sflag, size = 0x4, scoped, tag = 'scoped memory for stml_loss.7']
    %8 = vsyncpa [#allocation3], 0
    // Predicated region
    $region2: #{stml_loss.7} parent=1 // pred_check
      _
    $region3: #{stml_loss.7} parent=1 // pred_check_branch
      %10 = sbr.rel (0) target = $region5
    $region4: #{stml_loss.7} parent=1 // pred_region
      _
    $region5: #{stml_loss.7} parent=1 // pred_fallthru
      _
    // Predicated region
    $region6: #{stml_loss.7} parent=1 // pred_check
      _
    $region7: #{stml_loss.7} parent=1 // pred_check_branch
      %12 = sbr.rel (0) target = $region9
    $region8: #{stml_loss.7} parent=1 // pred_region
      _
    $region9: #{stml_loss.7} parent=1 // pred_fallthru
      _
    // Predicated region
    $region10: #{stml_loss.7} parent=1 // pred_check
      _
    $region11: #{stml_loss.7} parent=1 // pred_check_branch
      %14 = sbr.rel (0) target = $region13
    $region12: #{stml_loss.7} parent=1 // pred_region
      _
    $region13: #{stml_loss.7} parent=1 // pred_fallthru
      _
    %p15 = scmp.eq.s32.totalorder 0, 0
    // Predicated region
    $region14: #{stml_loss.7} parent=1 // pred_check
      %p16 = pneg %p15
    $region15: #{stml_loss.7} parent=1 // pred_check_branch
      %18 = sbr.rel (%p16) target = $region17
    $region16: #{stml_loss.7} parent=1 // pred_region
      %vm19 = vcmask 0
      %20 = vst.msk [vmem:[#allocation2] sm:$0x1] %vm19, 0.0
    $region17: #{stml_loss.7} parent=1 // pred_fallthru
      _
    %s21 = smul.u32 0, 16
    %v22 = vld [vmem:[%s0] sm:$0xff]
    %v23 = vld [vmem:[%s0 + $0x8] sm:$0xff]
    %v24 = vld [vmem:[%s1] sm:$0xff]
    %v25 = vld [vmem:[%s1 + $0x8] sm:$0xff]
    %v26 = vmul.f32 %v22, %v22
    %v27 = vmul.f32 %v23, %v23
    %vm28 = vcmask 261120
    %v29 = vsel %vm28, %v26, 0.0
    %30 = vadd.xlane.f32.xlu0 %v29
    %v31 = vpop.xlane.xlu0 %30
    %v32 = vsel %vm28, %v27, 0.0
    %33 = vadd.xlane.f32.xlu0 %v32
    %v34 = vpop.xlane.xlu0 %33
    %v35 = vmax.f32 %v31, 1e-24
    %v36 = vmax.f32 %v34, 1e-24
    %v37 = vrsqrt.pop %v35
    %v38 = vrsqrt.pop %v36
    %v39 = vmul.f32 %v22, %v37
    %v40 = vmul.f32 %v23, %v38
    %v41 = vmul.f32 %v24, %v24
    %v42 = vmul.f32 %v25, %v25
    %v43 = vsel %vm28, %v41, 0.0
    %44 = vadd.xlane.f32.xlu0 %v43
    %v45 = vpop.xlane.xlu0 %44
    %v46 = vsel %vm28, %v42, 0.0
    %47 = vadd.xlane.f32.xlu0 %v46
    %v48 = vpop.xlane.xlu0 %47
    %v49 = vmax.f32 %v45, 1e-24
    %v50 = vmax.f32 %v48, 1e-24
    %v51 = vrsqrt.pop %v49
    %v52 = vrsqrt.pop %v50
    %v53 = vmul.f32 %v24, %v51
    %v54 = vmul.f32 %v25, %v52
    %v56 = vsel %vm28, %v39, 0
    %v59 = vsel %vm28, %v40, 0
    %v62 = vsel %vm28, %v53, 0
    %v65 = vsel %vm28, %v54, 0
    %67 = vmatprep.subr.mxu0 0.0
    %68 = vmatpush1.xpose.msra.mxu0 %v62
    %69 = vmatprep.subr.mxu0 0.0
    %70 = vmatpush1.xpose.msra.mxu0 %v65
    %71 = vmatprep.subr.mxu0 0.0
    %72 = vmatpush1.xpose.msra.mxu0 0.0
    %73 = vmatprep.subr.mxu0 0.0
    %74 = vmatpush1.xpose.msra.mxu0 0.0
    %75 = vmatprep.subr.mxu0 0.0
    %76 = vmatpush1.xpose.msra.mxu0 0.0
    %77 = vmatprep.subr.mxu0 0.0
    %78 = vmatpush1.xpose.msra.mxu0 0.0
    %79 = vmatprep.subr.mxu0 0.0
    %80 = vmatpush1.xpose.msra.mxu0 0.0
    %81 = vmatprep.subr.mxu0 0.0
    %82 = vmatpush1.xpose.msra.mxu0 0.0
    %83 = vmatprep.subr.mxu0 0.0
    %84 = vmatpush1.xpose.msra.mxu0 0.0
    %85 = vmatprep.subr.mxu0 0.0
    %86 = vmatpush1.xpose.msra.mxu0 0.0
    %87 = vmatprep.subr.mxu0 0.0
    %88 = vmatpush1.xpose.msra.mxu0 0.0
    %89 = vmatprep.subr.mxu0 0.0
    %90 = vmatpush1.xpose.msra.mxu0 0.0
    %91 = vmatprep.subr.mxu0 0.0
    %92 = vmatpush1.xpose.msra.mxu0 0.0
    %93 = vmatprep.subr.mxu0 0.0
    %94 = vmatpush1.xpose.msra.mxu0 0.0
    %95 = vmatprep.subr.mxu0 0.0
    %96 = vmatpush1.xpose.msra.mxu0 0.0
    %97 = vmatprep.subr.mxu0 0.0
    %98 = vmatpush1.xpose.msra.mxu0 0.0
    %99 = vmatprep.subr.mxu0 0.0
    %100 = vmatpush1.xpose.msra.mxu0 0.0
    %101 = vmatprep.subr.mxu0 0.0
    %102 = vmatpush1.xpose.msra.mxu0 0.0
    %103 = vmatprep.subr.mxu0 0.0
    %104 = vmatpush1.xpose.msra.mxu0 0.0
    %105 = vmatprep.subr.mxu0 0.0
    %106 = vmatpush1.xpose.msra.mxu0 0.0
    %107 = vmatprep.subr.mxu0 0.0
    %108 = vmatpush1.xpose.msra.mxu0 0.0
    %109 = vmatprep.subr.mxu0 0.0
    %110 = vmatpush1.xpose.msra.mxu0 0.0
    %111 = vmatprep.subr.mxu0 0.0
    %112 = vmatpush1.xpose.msra.mxu0 0.0
    %113 = vmatprep.subr.mxu0 0.0
    %114 = vmatpush1.xpose.msra.mxu0 0.0
    %115 = vmatprep.subr.mxu0 0.0
    %116 = vmatpush1.xpose.msra.mxu0 0.0
    %117 = vmatprep.subr.mxu0 0.0
    %118 = vmatpush1.xpose.msra.mxu0 0.0
    %119 = vmatprep.subr.mxu0 0.0
    %120 = vmatpush1.xpose.msra.mxu0 0.0
    %121 = vmatprep.subr.mxu0 0.0
    %122 = vmatpush1.xpose.msra.mxu0 0.0
    %123 = vmatprep.subr.mxu0 0.0
    %124 = vmatpush1.xpose.msra.mxu0 0.0
    %125 = vmatprep.subr.mxu0 0.0
    %126 = vmatpush1.xpose.msra.mxu0 0.0
    %127 = vmatprep.subr.mxu0 0.0
    %128 = vmatpush1.xpose.msra.mxu0 0.0
    %129 = vmatprep.subr.mxu0 0.0
    %130 = vmatpush1.xpose.msra.mxu0 0.0
    %131 = vmatprep.mubr.f32.mxu0 0.0
    %132 = vmatmul.mubr.f32.gmra.mrb[0].mxu0 %v56
    %v133 = vpop.f32.mrb[0].mxu0
    %v134 = vadd.f32 0.0, %v133
    %v135 = vpop.f32.mrb[0].mxu0
    %136 = vmatprep.mubr.f32.mxu0 0.0
    %137 = vmatmul.mubr.f32.gmra.mrb[0].mxu0 %v59
    %v138 = vpop.f32.mrb[0].mxu0
    %v139 = vadd.f32 0.0, %v138
    %v140 = vpop.f32.mrb[0].mxu0
    %141 = vdwg.mxu0
    %v142 = vmul.f32 %v134, 2.0
    %v143 = vmul.f32 %v139, 2.0
    %v144 = vsub.f32 2.0, %v142
    %v145 = vsub.f32 2.0, %v143
    %v146 = vlaneseq
    %v147 = vshrl.u32 %v146, 7
    %v148 = vadd.s32 %v147, 8
    %v149 = vstv %s21
    %v150 = vadd.s32 %v149, %v147
    %v151 = vadd.s32 %v149, %v148
    %v152 = vlaneseq
    %v153 = vand.u32 %v152, 127
    %vm154 = vcmp.ne.s32.totalorder %v150, %v153
    %vm155 = vcmp.ne.s32.totalorder %v151, %v153
    %v156 = vsel %vm154, 1, 0
    %v157 = vsel %vm155, 1, 0
    %v158 = vcvt.s32.f32 %v156
    %v159 = vcvt.s32.f32 %v157
    %v160 = vmax.f32 %v144, 0.0
    %v161 = vmax.f32 %v145, 0.0
    %v162 = vmul.f32 %v160, %v158
    %v163 = vmul.f32 %v161, %v159
    %v164 = vrsqrt.pop %v162
    %v165 = vmul.f32 %v162, %v164
    %vm166 = vcmp.eq.f32.partialorder %v162, inf
    %v167 = vsel %vm166, %v162, %v165
    %vm168 = vcmp.eq.f32.partialorder %v162, 0.0
    %v169 = vand.u32 %v162, 2147483648
    %v170 = vsel %vm168, %v169, %v167
    %v171 = vrsqrt.pop %v163
    %v172 = vmul.f32 %v163, %v171
    %vm173 = vcmp.eq.f32.partialorder %v163, inf
    %v174 = vsel %vm173, %v163, %v172
    %vm175 = vcmp.eq.f32.partialorder %v163, 0.0
    %v176 = vand.u32 %v163, 2147483648
    %v177 = vsel %vm175, %v176, %v174
    %vm178 = vcmask 130048
    %v179 = vsel %vm178, %v170, 0.0
    %180 = vadd.xlane.f32.xlu0 %v179
    %v181 = vpop.xlane.xlu0 %180
    %v182 = vsel %vm178, %v177, 0.0
    %183 = vadd.xlane.f32.xlu0 %v182
    %v184 = vpop.xlane.xlu0 %183
    %v185 = vrcp.pop 16.0
    %v186 = vmul.f32 %v181, %v185
    %v187 = vmul.f32 %v184, %v185
    %v188 = vrcp.pop %v186
    %v189 = vmul.f32 %v170, %v188
    %v190 = vrcp.pop %v187
    %v191 = vmul.f32 %v177, %v190
    %v192 = vld [vmem:[%s2] sm:$0xff]
    %v193 = vld [vmem:[%s2 + $0x8] sm:$0xff]
    %v194 = vmul.f32 %v189, %v189
    %v195 = vmul.f32 %v191, %v191
    %v196 = vmul.f32 %v194, %v192
    %v197 = vmul.f32 %v195, %v193
    %v198 = vsub.f32 1.0, %v189
    %v199 = vsub.f32 1.0, %v191
    %v200 = vmax.f32 %v198, 0.0
    %v201 = vmax.f32 %v199, 0.0
    %v202 = vmul.f32 %v200, %v200
    %v203 = vmul.f32 %v201, %v201
    %v204 = vsub.f32 1.0, %v192
    %v205 = vsub.f32 1.0, %v193
    %v206 = vmul.f32 %v202, %v204
    %v207 = vmul.f32 %v203, %v205
    %v208 = vmul.f32 %v206, %v158
    %v209 = vmul.f32 %v207, %v159
    %v210 = vsel %vm178, %v196, 0.0
    %v211 = vsel %vm178, %v197, 0.0
    %v212 = vadd.f32 %v210, %v211
    %213 = vadd.xlane.f32.xlu0 %v212
    %v214 = vpop.xlane.xlu0 %213
    %v215 = vrot.slane %v214, 4
    %v216 = vadd.f32 %v214, %v215
    %v217 = vrot.slane %v216, 2
    %v218 = vadd.f32 %v216, %v217
    %v219 = vrot.slane %v218, 1
    %v220 = vadd.f32 %v218, %v219
    %s221 = vtos %v220
    %v222 = vsel %vm178, %v208, 0.0
    %v223 = vsel %vm178, %v209, 0.0
    %v224 = vadd.f32 %v222, %v223
    %225 = vadd.xlane.f32.xlu0 %v224
    %v226 = vpop.xlane.xlu0 %225
    %v227 = vrot.slane %v226, 4
    %v228 = vadd.f32 %v226, %v227
    %v229 = vrot.slane %v228, 2
    %v230 = vadd.f32 %v228, %v229
    %v231 = vrot.slane %v230, 1
    %v232 = vadd.f32 %v230, %v231
    %s233 = vtos %v232
    %s234 = sadd.f32 %s221, %s233
    %s235 = smul.f32 %s234, 0.004166667
    %v236 = vld [vmem:[#allocation2] sm:$0x1]
    %v237 = vstv %s235
    %v238 = vadd.f32 %v236, %v237
    %vm239 = vcmask 0
    %240 = vst.msk [vmem:[#allocation2] sm:$0x1] %vm239, %v238
    // Predicated region
    $region18: #{stml_loss.7} parent=1 // pred_check
      _
    $region19: #{stml_loss.7} parent=1 // pred_check_branch
      %242 = sbr.rel (0) target = $region21
    $region20: #{stml_loss.7} parent=1 // pred_region
      %s244 = ssub.s32 16, 16
      %245 = vsyncadd [#allocation3], %s244
      %s247 = sshll.u32 [#allocation2], 4
      %s248 = int_to_ptr.vmem [resolvable:$true] %s247
      %250 = dma.vmem_to_hbm [thread:$0]  %s248, 16, %s3, [#allocation3]
    $region21: #{stml_loss.7} parent=1 // pred_fallthru
      _
    // Predicated region
    $region22: #{stml_loss.7} parent=1 // pred_check
      _
    $region23: #{stml_loss.7} parent=1 // pred_check_branch
      %252 = sbr.rel (0) target = $region25
    $region24: #{stml_loss.7} parent=1 // pred_region
      %253 = dma.done [#allocation3], 16
    $region25: #{stml_loss.7} parent=1 // pred_fallthru
      _
    %254 = vsyncpa [#allocation3], 1

// kernel: stml_loss.5
$region0: #{stml_loss.5}
  #allocation0 [shape = 'u32[]', space=smem, size = 0x4, offset = 0x4, fixed_abs, tag = 'smem constant byte address 0x4 - core index']
  #allocation1 [shape = 'u32[144,128]{1,0:T(1,128)}', space=vmem, size = 0x12000, scoped, tag = 'internal scratch']
  %s0 = inlined_call_operand.hbm [shape: f32[16,32], index: 0, kind: input, shape index: {}, may-alias: {0,1}]
  %s1 = inlined_call_operand.hbm [shape: f32[16,32], index: 1, kind: input, shape index: {}, may-alias: {0,1}]
  %s2 = inlined_call_operand.vmem [shape: f32[16,16], index: 2, kind: output, shape index: {}]
  %s3 = sld [smem:[#allocation0]]
  $region26: #{stml_loss.5} parent=0
    _
  %s5 = ssub.s32 1, %s3
  %s6 = scalar_select 0, %s5, %s3
  $region1: #{stml_loss.5} parent=0
    #allocation2 [shape = 'u8[8192]{0}', space=vmem, size = 0x2000, scoped, tag = 'input window, operand 0, single buffered']
    #allocation3 [shape = 's32[1]{0}', space=sflag, size = 0x4, scoped, tag = 'scoped memory for stml_loss.5']
    #allocation4 [shape = 'u8[8192]{0}', space=vmem, size = 0x2000, scoped, tag = 'input window, operand 1, single buffered']
    #allocation5 [shape = 's32[1]{0}', space=sflag, size = 0x4, scoped, tag = 'scoped memory for stml_loss.5']
    %7 = vsyncpa [#allocation3], 0
    %8 = vsyncpa [#allocation5], 0
    // Predicated region
    $region2: #{stml_loss.5} parent=1 // pred_check
      _
    $region3: #{stml_loss.5} parent=1 // pred_check_branch
      %10 = sbr.rel (0) target = $region5
    $region4: #{stml_loss.5} parent=1 // pred_region
      %s12 = ssub.s32 256, 256
      %13 = vsyncadd [#allocation3], %s12
      %s14 = sshll.u32 [#allocation2], 4
      %s15 = int_to_ptr.vmem [resolvable:$true] %s14
      %20 = dma.hbm_to_vmem [thread:$0]  %s0, 256, %s15, [#allocation3], 128, 128, 8
    $region5: #{stml_loss.5} parent=1 // pred_fallthru
      _
    // Predicated region
    $region6: #{stml_loss.5} parent=1 // pred_check
      _
    $region7: #{stml_loss.5} parent=1 // pred_check_branch
      %22 = sbr.rel (0) target = $region9
    $region8: #{stml_loss.5} parent=1 // pred_region
      %s24 = ssub.s32 256, 256
      %25 = vsyncadd [#allocation5], %s24
      %s26 = sshll.u32 [#allocation4], 4
      %s27 = int_to_ptr.vmem [resolvable:$true] %s26
      %32 = dma.hbm_to_vmem [thread:$0]  %s1, 256, %s27, [#allocation5], 128, 128, 8
    $region9: #{stml_loss.5} parent=1 // pred_fallthru
      _
    // Predicated region
    $region10: #{stml_loss.5} parent=1 // pred_check
      _
    $region11: #{stml_loss.5} parent=1 // pred_check_branch
      %34 = sbr.rel (0) target = $region13
    $region12: #{stml_loss.5} parent=1 // pred_region
      %35 = dma.done [#allocation3], 256
    $region13: #{stml_loss.5} parent=1 // pred_fallthru
      _
    // Predicated region
    $region14: #{stml_loss.5} parent=1 // pred_check
      _
    $region15: #{stml_loss.5} parent=1 // pred_check_branch
      %37 = sbr.rel (0) target = $region17
    $region16: #{stml_loss.5} parent=1 // pred_region
      %38 = dma.done [#allocation5], 256
    $region17: #{stml_loss.5} parent=1 // pred_fallthru
      _
    %s39 = smul.u32 0, 16
    %v40 = vld [vmem:[#allocation2] sm:$0xff]
    %v41 = vld [vmem:[#allocation2 + $0x8] sm:$0xff]
    %v42 = vld [vmem:[#allocation4] sm:$0xff]
    %v43 = vld [vmem:[#allocation4 + $0x8] sm:$0xff]
    %v44 = vmul.f32 %v40, %v40
    %v45 = vmul.f32 %v41, %v41
    %vm46 = vcmask 261120
    %v47 = vsel %vm46, %v44, 0.0
    %48 = vadd.xlane.f32.xlu0 %v47
    %v49 = vpop.xlane.xlu0 %48
    %v50 = vsel %vm46, %v45, 0.0
    %51 = vadd.xlane.f32.xlu0 %v50
    %v52 = vpop.xlane.xlu0 %51
    %v53 = vmax.f32 %v49, 1e-24
    %v54 = vmax.f32 %v52, 1e-24
    %v55 = vrsqrt.pop %v53
    %v56 = vrsqrt.pop %v54
    %v57 = vmul.f32 %v40, %v55
    %v58 = vmul.f32 %v41, %v56
    %v59 = vmul.f32 %v42, %v42
    %v60 = vmul.f32 %v43, %v43
    %v61 = vsel %vm46, %v59, 0.0
    %62 = vadd.xlane.f32.xlu0 %v61
    %v63 = vpop.xlane.xlu0 %62
    %v64 = vsel %vm46, %v60, 0.0
    %65 = vadd.xlane.f32.xlu0 %v64
    %v66 = vpop.xlane.xlu0 %65
    %v67 = vmax.f32 %v63, 1e-24
    %v68 = vmax.f32 %v66, 1e-24
    %v69 = vrsqrt.pop %v67
    %v70 = vrsqrt.pop %v68
    %v71 = vmul.f32 %v42, %v69
    %v72 = vmul.f32 %v43, %v70
    %v74 = vsel %vm46, %v57, 0
    %v77 = vsel %vm46, %v58, 0
    %v80 = vsel %vm46, %v71, 0
    %v83 = vsel %vm46, %v72, 0
    %85 = vmatprep.subr.mxu0 0.0
    %86 = vmatpush1.xpose.msra.mxu0 %v80
    %87 = vmatprep.subr.mxu0 0.0
    %88 = vmatpush1.xpose.msra.mxu0 %v83
    %89 = vmatprep.subr.mxu0 0.0
    %90 = vmatpush1.xpose.msra.mxu0 0.0
    %91 = vmatprep.subr.mxu0 0.0
    %92 = vmatpush1.xpose.msra.mxu0 0.0
    %93 = vmatprep.subr.mxu0 0.0
    %94 = vmatpush1.xpose.msra.mxu0 0.0
    %95 = vmatprep.subr.mxu0 0.0
    %96 = vmatpush1.xpose.msra.mxu0 0.0
    %97 = vmatprep.subr.mxu0 0.0
    %98 = vmatpush1.xpose.msra.mxu0 0.0
    %99 = vmatprep.subr.mxu0 0.0
    %100 = vmatpush1.xpose.msra.mxu0 0.0
    %101 = vmatprep.subr.mxu0 0.0
    %102 = vmatpush1.xpose.msra.mxu0 0.0
    %103 = vmatprep.subr.mxu0 0.0
    %104 = vmatpush1.xpose.msra.mxu0 0.0
    %105 = vmatprep.subr.mxu0 0.0
    %106 = vmatpush1.xpose.msra.mxu0 0.0
    %107 = vmatprep.subr.mxu0 0.0
    %108 = vmatpush1.xpose.msra.mxu0 0.0
    %109 = vmatprep.subr.mxu0 0.0
    %110 = vmatpush1.xpose.msra.mxu0 0.0
    %111 = vmatprep.subr.mxu0 0.0
    %112 = vmatpush1.xpose.msra.mxu0 0.0
    %113 = vmatprep.subr.mxu0 0.0
    %114 = vmatpush1.xpose.msra.mxu0 0.0
    %115 = vmatprep.subr.mxu0 0.0
    %116 = vmatpush1.xpose.msra.mxu0 0.0
    %117 = vmatprep.subr.mxu0 0.0
    %118 = vmatpush1.xpose.msra.mxu0 0.0
    %119 = vmatprep.subr.mxu0 0.0
    %120 = vmatpush1.xpose.msra.mxu0 0.0
    %121 = vmatprep.subr.mxu0 0.0
    %122 = vmatpush1.xpose.msra.mxu0 0.0
    %123 = vmatprep.subr.mxu0 0.0
    %124 = vmatpush1.xpose.msra.mxu0 0.0
    %125 = vmatprep.subr.mxu0 0.0
    %126 = vmatpush1.xpose.msra.mxu0 0.0
    %127 = vmatprep.subr.mxu0 0.0
    %128 = vmatpush1.xpose.msra.mxu0 0.0
    %129 = vmatprep.subr.mxu0 0.0
    %130 = vmatpush1.xpose.msra.mxu0 0.0
    %131 = vmatprep.subr.mxu0 0.0
    %132 = vmatpush1.xpose.msra.mxu0 0.0
    %133 = vmatprep.subr.mxu0 0.0
    %134 = vmatpush1.xpose.msra.mxu0 0.0
    %135 = vmatprep.subr.mxu0 0.0
    %136 = vmatpush1.xpose.msra.mxu0 0.0
    %137 = vmatprep.subr.mxu0 0.0
    %138 = vmatpush1.xpose.msra.mxu0 0.0
    %139 = vmatprep.subr.mxu0 0.0
    %140 = vmatpush1.xpose.msra.mxu0 0.0
    %141 = vmatprep.subr.mxu0 0.0
    %142 = vmatpush1.xpose.msra.mxu0 0.0
    %143 = vmatprep.subr.mxu0 0.0
    %144 = vmatpush1.xpose.msra.mxu0 0.0
    %145 = vmatprep.subr.mxu0 0.0
    %146 = vmatpush1.xpose.msra.mxu0 0.0
    %147 = vmatprep.subr.mxu0 0.0
    %148 = vmatpush1.xpose.msra.mxu0 0.0
    %149 = vmatprep.mubr.f32.mxu0 0.0
    %150 = vmatmul.mubr.f32.gmra.mrb[0].mxu0 %v74
    %v151 = vpop.f32.mrb[0].mxu0
    %v152 = vadd.f32 0.0, %v151
    %v153 = vpop.f32.mrb[0].mxu0
    %154 = vmatprep.mubr.f32.mxu0 0.0
    %155 = vmatmul.mubr.f32.gmra.mrb[0].mxu0 %v77
    %v156 = vpop.f32.mrb[0].mxu0
    %v157 = vadd.f32 0.0, %v156
    %v158 = vpop.f32.mrb[0].mxu0
    %159 = vdwg.mxu0
    %v160 = vmul.f32 %v152, 2.0
    %v161 = vmul.f32 %v157, 2.0
    %v162 = vsub.f32 2.0, %v160
    %v163 = vsub.f32 2.0, %v161
    %v164 = vlaneseq
    %v165 = vshrl.u32 %v164, 7
    %v166 = vadd.s32 %v165, 8
    %v167 = vstv %s39
    %v168 = vadd.s32 %v167, %v165
    %v169 = vadd.s32 %v167, %v166
    %v170 = vlaneseq
    %v171 = vand.u32 %v170, 127
    %vm172 = vcmp.ne.s32.totalorder %v168, %v171
    %vm173 = vcmp.ne.s32.totalorder %v169, %v171
    %v174 = vsel %vm172, 1, 0
    %v175 = vsel %vm173, 1, 0
    %v176 = vcvt.s32.f32 %v174
    %v177 = vcvt.s32.f32 %v175
    %v178 = vmax.f32 %v162, 0.0
    %v179 = vmax.f32 %v163, 0.0
    %v180 = vmul.f32 %v178, %v176
    %v181 = vmul.f32 %v179, %v177
    %v182 = vsub.f32 0.0, %v180
    %v183 = vsub.f32 0.0, %v181
    %v184 = vmul.f32 %v182, 1.442695
    %v185 = vpow.pop %v184
    %v186 = vmul.f32 %v183, 1.442695
    %v187 = vpow.pop %v186
    %vm188 = vcmask 130048
    %189 = vst.msk [vmem:[%s2] sm:$0xff] %vm188, %v185
    %190 = vst.msk [vmem:[%s2 + $0x8] sm:$0xff] %vm188, %v187
    // Predicated region
    $region18: #{stml_loss.5} parent=1 // pred_check
      _
    $region19: #{stml_loss.5} parent=1 // pred_check_branch
      %192 = sbr.rel (0) target = $region21
    $region20: #{stml_loss.5} parent=1 // pred_region
      _
    $region21: #{stml_loss.5} parent=1 // pred_fallthru
      _
    // Predicated region
    $region22: #{stml_loss.5} parent=1 // pred_check
      _
    $region23: #{stml_loss.5} parent=1 // pred_check_branch
      %194 = sbr.rel (0) target = $region25
    $region24: #{stml_loss.5} parent=1 // pred_region
      _
    $region25: #{stml_loss.5} parent=1 // pred_fallthru
      _
    %195 = vsyncpa [#allocation3], 1
    %196 = vsyncpa [#allocation5], 1

// kernel: stml_loss.9
$region0: #{stml_loss.9}
  #allocation0 [shape = 'u32[]', space=smem, size = 0x4, offset = 0x4, fixed_abs, tag = 'smem constant byte address 0x4 - core index']
  #allocation1 [shape = 'u32[144,128]{1,0:T(1,128)}', space=vmem, size = 0x12000, scoped, tag = 'internal scratch']
  %s0 = inlined_call_operand.vmem [shape: f32[16,32], index: 0, kind: input, shape index: {}, may-alias: {0,1}]
  %s1 = inlined_call_operand.vmem [shape: f32[16,32], index: 1, kind: input, shape index: {}, may-alias: {0,1}]
  %s2 = inlined_call_operand.vmem [shape: f32[16,32], index: 2, kind: input, shape index: {}, may-alias: {2,3}]
  %s3 = inlined_call_operand.vmem [shape: f32[16,32], index: 3, kind: input, shape index: {}, may-alias: {2,3}]
  %s4 = inlined_call_operand.hbm [shape: f32[1,1], index: 4, kind: output, shape index: {}]
  %s5 = sld [smem:[#allocation0]]
  $region30: #{stml_loss.9} parent=0
    _
  %s7 = ssub.s32 1, %s5
  %s8 = scalar_select 0, %s7, %s5
  $region1: #{stml_loss.9} parent=0
    #allocation2 [shape = 'u8[512]{0}', space=vmem, size = 0x400, scoped, tag = 'output window, operand 0, single buffered']
    #allocation3 [shape = 's32[1]{0}', space=sflag, size = 0x4, scoped, tag = 'scoped memory for stml_loss.9']
    %9 = vsyncpa [#allocation3], 0
    // Predicated region
    $region2: #{stml_loss.9} parent=1 // pred_check
      _
    $region3: #{stml_loss.9} parent=1 // pred_check_branch
      %11 = sbr.rel (0) target = $region5
    $region4: #{stml_loss.9} parent=1 // pred_region
      _
    $region5: #{stml_loss.9} parent=1 // pred_fallthru
      _
    // Predicated region
    $region6: #{stml_loss.9} parent=1 // pred_check
      _
    $region7: #{stml_loss.9} parent=1 // pred_check_branch
      %13 = sbr.rel (0) target = $region9
    $region8: #{stml_loss.9} parent=1 // pred_region
      _
    $region9: #{stml_loss.9} parent=1 // pred_fallthru
      _
    // Predicated region
    $region10: #{stml_loss.9} parent=1 // pred_check
      _
    $region11: #{stml_loss.9} parent=1 // pred_check_branch
      %15 = sbr.rel (0) target = $region13
    $region12: #{stml_loss.9} parent=1 // pred_region
      _
    $region13: #{stml_loss.9} parent=1 // pred_fallthru
      _
    // Predicated region
    $region14: #{stml_loss.9} parent=1 // pred_check
      _
    $region15: #{stml_loss.9} parent=1 // pred_check_branch
      %17 = sbr.rel (0) target = $region17
    $region16: #{stml_loss.9} parent=1 // pred_region
      _
    $region17: #{stml_loss.9} parent=1 // pred_fallthru
      _
    %p18 = scmp.eq.s32.totalorder 0, 0
    // Predicated region
    $region18: #{stml_loss.9} parent=1 // pred_check
      %p19 = pneg %p18
    $region19: #{stml_loss.9} parent=1 // pred_check_branch
      %21 = sbr.rel (%p19) target = $region21
    $region20: #{stml_loss.9} parent=1 // pred_region
      %vm22 = vcmask 0
      %23 = vst.msk [vmem:[#allocation2] sm:$0x1] %vm22, 0.0
    $region21: #{stml_loss.9} parent=1 // pred_fallthru
      _
    %s24 = smul.u32 0, 16
    %v25 = vld [vmem:[%s0] sm:$0xff]
    %v26 = vld [vmem:[%s0 + $0x8] sm:$0xff]
    %v27 = vld [vmem:[%s1] sm:$0xff]
    %v28 = vld [vmem:[%s1 + $0x8] sm:$0xff]
    %v29 = vmul.f32 %v25, %v25
    %v30 = vmul.f32 %v26, %v26
    %vm31 = vcmask 261120
    %v32 = vsel %vm31, %v29, 0.0
    %33 = vadd.xlane.f32.xlu0 %v32
    %v34 = vpop.xlane.xlu0 %33
    %v35 = vsel %vm31, %v30, 0.0
    %36 = vadd.xlane.f32.xlu0 %v35
    %v37 = vpop.xlane.xlu0 %36
    %v38 = vmax.f32 %v34, 1e-24
    %v39 = vmax.f32 %v37, 1e-24
    %v40 = vrsqrt.pop %v38
    %v41 = vrsqrt.pop %v39
    %v42 = vmul.f32 %v25, %v40
    %v43 = vmul.f32 %v26, %v41
    %v44 = vmul.f32 %v27, %v27
    %v45 = vmul.f32 %v28, %v28
    %v46 = vsel %vm31, %v44, 0.0
    %47 = vadd.xlane.f32.xlu0 %v46
    %v48 = vpop.xlane.xlu0 %47
    %v49 = vsel %vm31, %v45, 0.0
    %50 = vadd.xlane.f32.xlu0 %v49
    %v51 = vpop.xlane.xlu0 %50
    %v52 = vmax.f32 %v48, 1e-24
    %v53 = vmax.f32 %v51, 1e-24
    %v54 = vrsqrt.pop %v52
    %v55 = vrsqrt.pop %v53
    %v56 = vmul.f32 %v27, %v54
    %v57 = vmul.f32 %v28, %v55
    %v59 = vsel %vm31, %v42, 0
    %v62 = vsel %vm31, %v43, 0
    %v65 = vsel %vm31, %v56, 0
    %v68 = vsel %vm31, %v57, 0
    %70 = vmatprep.subr.mxu0 0.0
    %71 = vmatpush1.xpose.msra.mxu0 %v65
    %72 = vmatprep.subr.mxu0 0.0
    %73 = vmatpush1.xpose.msra.mxu0 %v68
    %74 = vmatprep.subr.mxu0 0.0
    %75 = vmatpush1.xpose.msra.mxu0 0.0
    %76 = vmatprep.subr.mxu0 0.0
    %77 = vmatpush1.xpose.msra.mxu0 0.0
    %78 = vmatprep.subr.mxu0 0.0
    %79 = vmatpush1.xpose.msra.mxu0 0.0
    %80 = vmatprep.subr.mxu0 0.0
    %81 = vmatpush1.xpose.msra.mxu0 0.0
    %82 = vmatprep.subr.mxu0 0.0
    %83 = vmatpush1.xpose.msra.mxu0 0.0
    %84 = vmatprep.subr.mxu0 0.0
    %85 = vmatpush1.xpose.msra.mxu0 0.0
    %86 = vmatprep.subr.mxu0 0.0
    %87 = vmatpush1.xpose.msra.mxu0 0.0
    %88 = vmatprep.subr.mxu0 0.0
    %89 = vmatpush1.xpose.msra.mxu0 0.0
    %90 = vmatprep.subr.mxu0 0.0
    %91 = vmatpush1.xpose.msra.mxu0 0.0
    %92 = vmatprep.subr.mxu0 0.0
    %93 = vmatpush1.xpose.msra.mxu0 0.0
    %94 = vmatprep.subr.mxu0 0.0
    %95 = vmatpush1.xpose.msra.mxu0 0.0
    %96 = vmatprep.subr.mxu0 0.0
    %97 = vmatpush1.xpose.msra.mxu0 0.0
    %98 = vmatprep.subr.mxu0 0.0
    %99 = vmatpush1.xpose.msra.mxu0 0.0
    %100 = vmatprep.subr.mxu0 0.0
    %101 = vmatpush1.xpose.msra.mxu0 0.0
    %102 = vmatprep.subr.mxu0 0.0
    %103 = vmatpush1.xpose.msra.mxu0 0.0
    %104 = vmatprep.subr.mxu0 0.0
    %105 = vmatpush1.xpose.msra.mxu0 0.0
    %106 = vmatprep.subr.mxu0 0.0
    %107 = vmatpush1.xpose.msra.mxu0 0.0
    %108 = vmatprep.subr.mxu0 0.0
    %109 = vmatpush1.xpose.msra.mxu0 0.0
    %110 = vmatprep.subr.mxu0 0.0
    %111 = vmatpush1.xpose.msra.mxu0 0.0
    %112 = vmatprep.subr.mxu0 0.0
    %113 = vmatpush1.xpose.msra.mxu0 0.0
    %114 = vmatprep.subr.mxu0 0.0
    %115 = vmatpush1.xpose.msra.mxu0 0.0
    %116 = vmatprep.subr.mxu0 0.0
    %117 = vmatpush1.xpose.msra.mxu0 0.0
    %118 = vmatprep.subr.mxu0 0.0
    %119 = vmatpush1.xpose.msra.mxu0 0.0
    %120 = vmatprep.subr.mxu0 0.0
    %121 = vmatpush1.xpose.msra.mxu0 0.0
    %122 = vmatprep.subr.mxu0 0.0
    %123 = vmatpush1.xpose.msra.mxu0 0.0
    %124 = vmatprep.subr.mxu0 0.0
    %125 = vmatpush1.xpose.msra.mxu0 0.0
    %126 = vmatprep.subr.mxu0 0.0
    %127 = vmatpush1.xpose.msra.mxu0 0.0
    %128 = vmatprep.subr.mxu0 0.0
    %129 = vmatpush1.xpose.msra.mxu0 0.0
    %130 = vmatprep.subr.mxu0 0.0
    %131 = vmatpush1.xpose.msra.mxu0 0.0
    %132 = vmatprep.subr.mxu0 0.0
    %133 = vmatpush1.xpose.msra.mxu0 0.0
    %134 = vmatprep.mubr.f32.mxu0 0.0
    %135 = vmatmul.mubr.f32.gmra.mrb[0].mxu0 %v59
    %v136 = vpop.f32.mrb[0].mxu0
    %v137 = vadd.f32 0.0, %v136
    %v138 = vpop.f32.mrb[0].mxu0
    %139 = vmatprep.mubr.f32.mxu0 0.0
    %140 = vmatmul.mubr.f32.gmra.mrb[0].mxu0 %v62
    %v141 = vpop.f32.mrb[0].mxu0
    %v142 = vadd.f32 0.0, %v141
    %v143 = vpop.f32.mrb[0].mxu0
    %144 = vdwg.mxu0
    %v145 = vmul.f32 %v137, 2.0
    %v146 = vmul.f32 %v142, 2.0
    %v147 = vsub.f32 2.0, %v145
    %v148 = vsub.f32 2.0, %v146
    %v149 = vlaneseq
    %v150 = vshrl.u32 %v149, 7
    %v151 = vadd.s32 %v150, 8
    %v152 = vstv %s24
    %v153 = vadd.s32 %v152, %v150
    %v154 = vadd.s32 %v152, %v151
    %v155 = vlaneseq
    %v156 = vand.u32 %v155, 127
    %vm157 = vcmp.ne.s32.totalorder %v153, %v156
    %vm158 = vcmp.ne.s32.totalorder %v154, %v156
    %v159 = vsel %vm157, 1, 0
    %v160 = vsel %vm158, 1, 0
    %v161 = vcvt.s32.f32 %v159
    %v162 = vcvt.s32.f32 %v160
    %v163 = vmax.f32 %v147, 0.0
    %v164 = vmax.f32 %v148, 0.0
    %v165 = vmul.f32 %v163, %v161
    %v166 = vmul.f32 %v164, %v162
    %v167 = vld [vmem:[%s2] sm:$0xff]
    %v168 = vld [vmem:[%s2 + $0x8] sm:$0xff]
    %v169 = vld [vmem:[%s3] sm:$0xff]
    %v170 = vld [vmem:[%s3 + $0x8] sm:$0xff]
    %v171 = vmul.f32 %v167, %v167
    %v172 = vmul.f32 %v168, %v168
    %v173 = vsel %vm31, %v171, 0.0
    %174 = vadd.xlane.f32.xlu0 %v173
    %v175 = vpop.xlane.xlu0 %174
    %v176 = vsel %vm31, %v172, 0.0
    %177 = vadd.xlane.f32.xlu0 %v176
    %v178 = vpop.xlane.xlu0 %177
    %v179 = vmax.f32 %v175, 1e-24
    %v180 = vmax.f32 %v178, 1e-24
    %v181 = vrsqrt.pop %v179
    %v182 = vrsqrt.pop %v180
    %v183 = vmul.f32 %v167, %v181
    %v184 = vmul.f32 %v168, %v182
    %v185 = vmul.f32 %v169, %v169
    %v186 = vmul.f32 %v170, %v170
    %v187 = vsel %vm31, %v185, 0.0
    %188 = vadd.xlane.f32.xlu0 %v187
    %v189 = vpop.xlane.xlu0 %188
    %v190 = vsel %vm31, %v186, 0.0
    %191 = vadd.xlane.f32.xlu0 %v190
    %v192 = vpop.xlane.xlu0 %191
    %v193 = vmax.f32 %v189, 1e-24
    %v194 = vmax.f32 %v192, 1e-24
    %v195 = vrsqrt.pop %v193
    %v196 = vrsqrt.pop %v194
    %v197 = vmul.f32 %v169, %v195
    %v198 = vmul.f32 %v170, %v196
    %v200 = vsel %vm31, %v183, 0
    %v203 = vsel %vm31, %v184, 0
    %v206 = vsel %vm31, %v197, 0
    %v209 = vsel %vm31, %v198, 0
    %211 = vmatprep.subr.mxu0 0.0
    %212 = vmatpush1.xpose.msra.mxu0 %v206
    %213 = vmatprep.subr.mxu0 0.0
    %214 = vmatpush1.xpose.msra.mxu0 %v209
    %215 = vmatprep.subr.mxu0 0.0
    %216 = vmatpush1.xpose.msra.mxu0 0.0
    %217 = vmatprep.subr.mxu0 0.0
    %218 = vmatpush1.xpose.msra.mxu0 0.0
    %219 = vmatprep.subr.mxu0 0.0
    %220 = vmatpush1.xpose.msra.mxu0 0.0
    %221 = vmatprep.subr.mxu0 0.0
    %222 = vmatpush1.xpose.msra.mxu0 0.0
    %223 = vmatprep.subr.mxu0 0.0
    %224 = vmatpush1.xpose.msra.mxu0 0.0
    %225 = vmatprep.subr.mxu0 0.0
    %226 = vmatpush1.xpose.msra.mxu0 0.0
    %227 = vmatprep.subr.mxu0 0.0
    %228 = vmatpush1.xpose.msra.mxu0 0.0
    %229 = vmatprep.subr.mxu0 0.0
    %230 = vmatpush1.xpose.msra.mxu0 0.0
    %231 = vmatprep.subr.mxu0 0.0
    %232 = vmatpush1.xpose.msra.mxu0 0.0
    %233 = vmatprep.subr.mxu0 0.0
    %234 = vmatpush1.xpose.msra.mxu0 0.0
    %235 = vmatprep.subr.mxu0 0.0
    %236 = vmatpush1.xpose.msra.mxu0 0.0
    %237 = vmatprep.subr.mxu0 0.0
    %238 = vmatpush1.xpose.msra.mxu0 0.0
    %239 = vmatprep.subr.mxu0 0.0
    %240 = vmatpush1.xpose.msra.mxu0 0.0
    %241 = vmatprep.subr.mxu0 0.0
    %242 = vmatpush1.xpose.msra.mxu0 0.0
    %243 = vmatprep.subr.mxu0 0.0
    %244 = vmatpush1.xpose.msra.mxu0 0.0
    %245 = vmatprep.subr.mxu0 0.0
    %246 = vmatpush1.xpose.msra.mxu0 0.0
    %247 = vmatprep.subr.mxu0 0.0
    %248 = vmatpush1.xpose.msra.mxu0 0.0
    %249 = vmatprep.subr.mxu0 0.0
    %250 = vmatpush1.xpose.msra.mxu0 0.0
    %251 = vmatprep.subr.mxu0 0.0
    %252 = vmatpush1.xpose.msra.mxu0 0.0
    %253 = vmatprep.subr.mxu0 0.0
    %254 = vmatpush1.xpose.msra.mxu0 0.0
    %255 = vmatprep.subr.mxu0 0.0
    %256 = vmatpush1.xpose.msra.mxu0 0.0
    %257 = vmatprep.subr.mxu0 0.0
    %258 = vmatpush1.xpose.msra.mxu0 0.0
    %259 = vmatprep.subr.mxu0 0.0
    %260 = vmatpush1.xpose.msra.mxu0 0.0
    %261 = vmatprep.subr.mxu0 0.0
    %262 = vmatpush1.xpose.msra.mxu0 0.0
    %263 = vmatprep.subr.mxu0 0.0
    %264 = vmatpush1.xpose.msra.mxu0 0.0
    %265 = vmatprep.subr.mxu0 0.0
    %266 = vmatpush1.xpose.msra.mxu0 0.0
    %267 = vmatprep.subr.mxu0 0.0
    %268 = vmatpush1.xpose.msra.mxu0 0.0
    %269 = vmatprep.subr.mxu0 0.0
    %270 = vmatpush1.xpose.msra.mxu0 0.0
    %271 = vmatprep.subr.mxu0 0.0
    %272 = vmatpush1.xpose.msra.mxu0 0.0
    %273 = vmatprep.subr.mxu0 0.0
    %274 = vmatpush1.xpose.msra.mxu0 0.0
    %275 = vmatprep.mubr.f32.mxu0 0.0
    %276 = vmatmul.mubr.f32.gmra.mrb[0].mxu0 %v200
    %v277 = vpop.f32.mrb[0].mxu0
    %v278 = vadd.f32 0.0, %v277
    %v279 = vpop.f32.mrb[0].mxu0
    %280 = vmatprep.mubr.f32.mxu0 0.0
    %281 = vmatmul.mubr.f32.gmra.mrb[0].mxu0 %v203
    %v282 = vpop.f32.mrb[0].mxu0
    %v283 = vadd.f32 0.0, %v282
    %v284 = vpop.f32.mrb[0].mxu0
    %285 = vdwg.mxu0
    %v286 = vmul.f32 %v278, 2.0
    %v287 = vmul.f32 %v283, 2.0
    %v288 = vsub.f32 2.0, %v286
    %v289 = vsub.f32 2.0, %v287
    %v290 = vmax.f32 %v288, 0.0
    %v291 = vmax.f32 %v289, 0.0
    %v292 = vmul.f32 %v290, %v161
    %v293 = vmul.f32 %v291, %v162
    %v294 = vrsqrt.pop %v165
    %v295 = vmul.f32 %v165, %v294
    %vm296 = vcmp.eq.f32.partialorder %v165, inf
    %v297 = vsel %vm296, %v165, %v295
    %vm298 = vcmp.eq.f32.partialorder %v165, 0.0
    %v299 = vand.u32 %v165, 2147483648
    %v300 = vsel %vm298, %v299, %v297
    %v301 = vrsqrt.pop %v166
    %v302 = vmul.f32 %v166, %v301
    %vm303 = vcmp.eq.f32.partialorder %v166, inf
    %v304 = vsel %vm303, %v166, %v302
    %vm305 = vcmp.eq.f32.partialorder %v166, 0.0
    %v306 = vand.u32 %v166, 2147483648
    %v307 = vsel %vm305, %v306, %v304
    %v308 = vrsqrt.pop %v292
    %v309 = vmul.f32 %v292, %v308
    %vm310 = vcmp.eq.f32.partialorder %v292, inf
    %v311 = vsel %vm310, %v292, %v309
    %vm312 = vcmp.eq.f32.partialorder %v292, 0.0
    %v313 = vand.u32 %v292, 2147483648
    %v314 = vsel %vm312, %v313, %v311
    %v315 = vrsqrt.pop %v293
    %v316 = vmul.f32 %v293, %v315
    %vm317 = vcmp.eq.f32.partialorder %v293, inf
    %v318 = vsel %vm317, %v293, %v316
    %vm319 = vcmp.eq.f32.partialorder %v293, 0.0
    %v320 = vand.u32 %v293, 2147483648
    %v321 = vsel %vm319, %v320, %v318
    %vm322 = vcmask 130048
    %v323 = vsel %vm322, %v300, 0.0
    %324 = vadd.xlane.f32.xlu0 %v323
    %v325 = vpop.xlane.xlu0 %324
    %v326 = vsel %vm322, %v307, 0.0
    %327 = vadd.xlane.f32.xlu0 %v326
    %v328 = vpop.xlane.xlu0 %327
    %v329 = vrcp.pop 16.0
    %v330 = vmul.f32 %v325, %v329
    %v331 = vmul.f32 %v328, %v329
    %v332 = vrcp.pop %v330
    %v333 = vmul.f32 %v300, %v332
    %v334 = vrcp.pop %v331
    %v335 = vmul.f32 %v307, %v334
    %v336 = vsel %vm322, %v314, 0.0
    %337 = vadd.xlane.f32.xlu0 %v336
    %v338 = vpop.xlane.xlu0 %337
    %v339 = vsel %vm322, %v321, 0.0
    %340 = vadd.xlane.f32.xlu0 %v339
    %v341 = vpop.xlane.xlu0 %340
    %v342 = vmul.f32 %v338, %v329
    %v343 = vmul.f32 %v341, %v329
    %v344 = vrcp.pop %v342
    %v345 = vmul.f32 %v314, %v344
    %v346 = vrcp.pop %v343
    %v347 = vmul.f32 %v321, %v346
    %v348 = vsub.f32 0.0, %v333
    %v349 = vsub.f32 0.0, %v335
    %v350 = vsub.f32 0.0, %v345
    %v351 = vsub.f32 0.0, %v347
    %v352 = vsel %vm322, %v348, -inf
    %353 = vmax.xlane.f32.xlu0 %v352
    %v354 = vpop.xlane.xlu0 %353
    %v355 = vsel %vm322, %v349, -inf
    %356 = vmax.xlane.f32.xlu0 %v355
    %v357 = vpop.xlane.xlu0 %356
    %v358 = vsub.f32 %v348, %v354
    %v359 = vsub.f32 %v349, %v357
    %v360 = vmul.f32 %v358, 1.442695
    %v361 = vpow.pop %v360
    %v362 = vmul.f32 %v359, 1.442695
    %v363 = vpow.pop %v362
    %v364 = vsel %vm322, %v361, 0.0
    %365 = vadd.xlane.f32.xlu0 %v364
    %v366 = vpop.xlane.xlu0 %365
    %v367 = vsel %vm322, %v363, 0.0
    %368 = vadd.xlane.f32.xlu0 %v367
    %v369 = vpop.xlane.xlu0 %368
    %v370 = vlog2.pop %v366
    %v371 = vmul.f32 %v370, 0.6931472
    %v372 = vlog2.pop %v369
    %v373 = vmul.f32 %v372, 0.6931472
    %v374 = vsub.f32 %v358, %v371
    %v375 = vsub.f32 %v359, %v373
    %v376 = vsel %vm322, %v350, -inf
    %377 = vmax.xlane.f32.xlu0 %v376
    %v378 = vpop.xlane.xlu0 %377
    %v379 = vsel %vm322, %v351, -inf
    %380 = vmax.xlane.f32.xlu0 %v379
    %v381 = vpop.xlane.xlu0 %380
    %v382 = vsub.f32 %v350, %v378
    %v383 = vsub.f32 %v351, %v381
    %v384 = vmul.f32 %v382, 1.442695
    %v385 = vpow.pop %v384
    %v386 = vmul.f32 %v383, 1.442695
    %v387 = vpow.pop %v386
    %v388 = vsel %vm322, %v385, 0.0
    %389 = vadd.xlane.f32.xlu0 %v388
    %v390 = vpop.xlane.xlu0 %389
    %v391 = vsel %vm322, %v387, 0.0
    %392 = vadd.xlane.f32.xlu0 %v391
    %v393 = vpop.xlane.xlu0 %392
    %v394 = vrcp.pop %v390
    %v395 = vmul.f32 %v385, %v394
    %v396 = vrcp.pop %v393
    %v397 = vmul.f32 %v387, %v396
    %v398 = vlog2.pop %v390
    %v399 = vmul.f32 %v398, 0.6931472
    %v400 = vlog2.pop %v393
    %v401 = vmul.f32 %v400, 0.6931472
    %v402 = vsub.f32 %v382, %v399
    %v403 = vsub.f32 %v383, %v401
    %v404 = vsub.f32 %v402, %v374
    %v405 = vsub.f32 %v403, %v375
    %v406 = vmul.f32 %v395, %v404
    %v407 = vmul.f32 %v397, %v405
    %v408 = vsel %vm322, %v406, 0.0
    %v409 = vsel %vm322, %v407, 0.0
    %v410 = vadd.f32 %v408, %v409
    %411 = vadd.xlane.f32.xlu0 %v410
    %v412 = vpop.xlane.xlu0 %411
    %v413 = vrot.slane %v412, 4
    %v414 = vadd.f32 %v412, %v413
    %v415 = vrot.slane %v414, 2
    %v416 = vadd.f32 %v414, %v415
    %v417 = vrot.slane %v416, 1
    %v418 = vadd.f32 %v416, %v417
    %s419 = vtos %v418
    %s420 = smul.f32 %s419, 0.0625
    %v421 = vld [vmem:[#allocation2] sm:$0x1]
    %v422 = vstv %s420
    %v423 = vadd.f32 %v421, %v422
    %vm424 = vcmask 0
    %425 = vst.msk [vmem:[#allocation2] sm:$0x1] %vm424, %v423
    // Predicated region
    $region22: #{stml_loss.9} parent=1 // pred_check
      _
    $region23: #{stml_loss.9} parent=1 // pred_check_branch
      %427 = sbr.rel (0) target = $region25
    $region24: #{stml_loss.9} parent=1 // pred_region
      %s429 = ssub.s32 16, 16
      %430 = vsyncadd [#allocation3], %s429
      %s432 = sshll.u32 [#allocation2], 4
      %s433 = int_to_ptr.vmem [resolvable:$true] %s432
      %435 = dma.vmem_to_hbm [thread:$0]  %s433, 16, %s4, [#allocation3]
    $region25: #{stml_loss.9} parent=1 // pred_fallthru
      _
    // Predicated region
    $region26: #{stml_loss.9} parent=1 // pred_check
      _
    $region27: #{stml_loss.9} parent=1 // pred_check_branch
      %437 = sbr.rel (0) target = $region29
    $region28: #{stml_loss.9} parent=1 // pred_region
      %438 = dma.done [#allocation3], 16
    $region29: #{stml_loss.9} parent=1 // pred_fallthru
      _
    %439 = vsyncpa [#allocation3], 1

</llo_original>
